<compile_context>
chip_gen: v5e
topology: v5e:2x2
jax: 0.10.0
libtpu: 0.0.40
codegen_flags: <defaults>
</compile_context>

<pallas_src>
import functools

import jax
import jax.numpy as jnp
from jax import lax
from jax.experimental import pallas as pl
from jax.experimental.pallas import tpu as pltpu

# MXU operand dtypes (accumulation is always f32 via preferred_element_type).
MATMUL_DTYPE = jnp.bfloat16   # stage 1 / stage 3 parallel matmuls
RECUR_DTYPE = jnp.bfloat16    # h_prev @ W_hh inside the recurrence

MAX_TIME_BLOCK = 32           # LSTM time steps per recurrent grid iteration.
# Explicit scoped-VMEM budget (review): v7x has 64 MiB physical VMEM per core;
# every block used below stays far under this.
VMEM_LIMIT_BYTES = 64 * 1024 * 1024


def _round_up(x, m):
    return (x + m - 1) // m * m


def _sublane_align(dtype):
    # bf16 vregs pack 16 rows per sublane tile; f32 packs 8.
    return 16 if jnp.dtype(dtype).itemsize == 2 else 8


def _pick_tile(dim, pref, align):
    """Largest tile <= pref that is a multiple of `align`; if the whole dim fits the
    preference use the full extent (always a legal block).  Non-dividing tiles are
    fine: grids below use pl.cdiv + Pallas ragged-edge masking (no vocab-sized
    fallback blocks)."""
    if dim <= pref:
        return dim
    return max(align, (pref // align) * align)


# --------------------------------------------------------------------------
# Parallel matmul + bias kernel (input projection [flat path] and the FC).
# --------------------------------------------------------------------------
def _matmul_bias_kernel(x_ref, w_ref, b_ref, o_ref):
    acc = jnp.dot(x_ref[...], w_ref[...], preferred_element_type=jnp.float32)
    o_ref[...] = (acc + b_ref[...]).astype(o_ref.dtype)


def _matmul_bias(x, w, b, *, tm_pref=512, tn_pref=256):
    """x:(M,K) @ w:(K,N) + b:(1,N) -> (M,N) f32; tiled parallel pallas_call.

    tn is clamped to <=256 lanes so vocab-sized N never produces multi-MiB
    double-buffered blocks; N is split into >=2 blocks whenever possible so both
    v7x TensorCores get work."""
    M, K = x.shape
    _, N = w.shape

    align_m = _sublane_align(MATMUL_DTYPE)
    M_pad = _round_up(M, align_m)
    if M_pad != M:
        x = jnp.pad(x, ((0, M_pad - M), (0, 0)))

    tm = _pick_tile(M_pad, tm_pref, align_m)
    tn = _pick_tile(N, tn_pref, 128)
    gm = pl.cdiv(M_pad, tm)
    gn = pl.cdiv(N, tn)
    if gm == 1 and gn == 1 and N >= 256:
        # Ensure at least one 'parallel' axis has >=2 blocks (v7x: 2 TensorCores).
        tn = _round_up(-(-N // 2), 128)
        gn = pl.cdiv(N, tn)

    out = pl.pallas_call(
        _matmul_bias_kernel,
        out_shape=jax.ShapeDtypeStruct((M_pad, N), jnp.float32),
        grid_spec=pltpu.PrefetchScalarGridSpec(
            num_scalar_prefetch=0,
            grid=(gm, gn),
            in_specs=[
                pl.BlockSpec((tm, K), lambda i, j: (i, 0)),
                pl.BlockSpec((K, tn), lambda i, j: (0, j)),
                pl.BlockSpec((1, tn), lambda i, j: (0, j)),
            ],
            out_specs=pl.BlockSpec((tm, tn), lambda i, j: (i, j)),
        ),
        compiler_params=pltpu.CompilerParams(
            dimension_semantics=("parallel", "parallel"),
            vmem_limit_bytes=VMEM_LIMIT_BYTES,
        ),
    )(x.astype(MATMUL_DTYPE), w.astype(MATMUL_DTYPE), b.astype(jnp.float32))
    return out[:M]


# --------------------------------------------------------------------------
# Input projection that writes the per-gate (T, 4, B, H) layout directly
# (small-H path) — replaces the old jnp.transpose HBM round trip.
# --------------------------------------------------------------------------
def _input_proj_gate_kernel(x_ref, w_ref, b_ref, o_ref):
    # x_ref: (tt*B_pad, E); w_ref: (1, E, H); b_ref: (1, 1, H); o_ref: (tt, 1, B_pad, H)
    acc = jnp.dot(x_ref[...], w_ref[0], preferred_element_type=jnp.float32)
    o_ref[...] = (acc + b_ref[0]).reshape(o_ref.shape).astype(o_ref.dtype)


def _input_proj_per_gate(x_flat, w_ih_g, b_g, *, t_pad, b_pad):
    """x_flat:(T_pad*B_pad,E); w_ih_g:(4,E,H); b_g:(4,1,H) -> (T_pad,4,B_pad,H) f32,
    written in its final layout by out_specs (no post-hoc transpose)."""
    E = x_flat.shape[1]
    H = w_ih_g.shape[-1]
    tt = min(t_pad, max(1, 512 // b_pad))        # ~512 MXU rows per block
    return pl.pallas_call(
        _input_proj_gate_kernel,
        out_shape=jax.ShapeDtypeStruct((t_pad, 4, b_pad, H), jnp.float32),
        grid_spec=pltpu.PrefetchScalarGridSpec(
            num_scalar_prefetch=0,
            grid=(pl.cdiv(t_pad, tt), 4),
            in_specs=[
                pl.BlockSpec((tt * b_pad, E), lambda t, g: (t, 0)),
                pl.BlockSpec((1, E, H), lambda t, g: (g, 0, 0)),
                pl.BlockSpec((1, 1, H), lambda t, g: (g, 0, 0)),
            ],
            out_specs=pl.BlockSpec((tt, 1, b_pad, H), lambda t, g: (t, g, 0, 0)),
        ),
        compiler_params=pltpu.CompilerParams(
            dimension_semantics=("parallel", "parallel"),
            vmem_limit_bytes=VMEM_LIMIT_BYTES,
        ),
    )(x_flat.astype(MATMUL_DTYPE), w_ih_g.astype(MATMUL_DTYPE),
      b_g.astype(jnp.float32))


# --------------------------------------------------------------------------
# Sequential LSTM recurrence: only h_prev @ W_hh + gate nonlinearities.
# --------------------------------------------------------------------------
def _lstm_recurrent_flat_kernel(gx_ref, whh_ref, h_out_ref, h_scr, c_scr, *, hidden):
    """Lane-aligned path (H % 128 == 0).
    gx_ref:(U,bb,4H) f32; whh_ref:(H,4H) bf16; h_out_ref:(U,bb,H) f32."""
    U = gx_ref.shape[0]
    H = hidden

    @pl.when(pl.program_id(1) == 0)
    def _init():
        h_scr[...] = jnp.zeros_like(h_scr)
        c_scr[...] = jnp.zeros_like(c_scr)

    w = whh_ref[...]                               # hoisted out of the time loop

    def step(u, carry):
        h_prev, c_prev = carry
        # ONE MXU weight stream per step; gate slices land on 128-lane boundaries.
        gates = gx_ref[u] + jnp.dot(h_prev.astype(w.dtype), w,
                                    preferred_element_type=jnp.float32)
        i = jax.nn.sigmoid(gates[:, 0 * H:1 * H])
        f = jax.nn.sigmoid(gates[:, 1 * H:2 * H])
        g = jnp.tanh(gates[:, 2 * H:3 * H])
        o = jax.nn.sigmoid(gates[:, 3 * H:4 * H])
        c = f * c_prev + i * g
        h = o * jnp.tanh(c)
        h_out_ref[u] = h.astype(h_out_ref.dtype)
        return (h, c)

    h_last, c_last = lax.fori_loop(0, U, step, (h_scr[...], c_scr[...]),
                                   unroll=True)
    h_scr[...] = h_last
    c_scr[...] = c_last


def _lstm_recurrent_gated_kernel(gx_ref, whh_ref, h_out_ref, h_scr, c_scr):
    """Small-H path (H not lane aligned): per-gate slabs avoid intra-vreg slices.
    gx_ref:(U,4,bb,H) f32; whh_ref:(4,H,H) bf16; h_out_ref:(U,bb,H) f32."""
    U = gx_ref.shape[0]

    @pl.when(pl.program_id(1) == 0)
    def _init():
        h_scr[...] = jnp.zeros_like(h_scr)
        c_scr[...] = jnp.zeros_like(c_scr)

    w_i = whh_ref[0]
    w_f = whh_ref[1]
    w_g = whh_ref[2]
    w_o = whh_ref[3]

    def step(u, carry):
        h_prev, c_prev = carry
        hb = h_prev.astype(w_i.dtype)
        gx = gx_ref[u]                             # (4, bb, H)
        i = jax.nn.sigmoid(gx[0] + jnp.dot(hb, w_i, preferred_element_type=jnp.float32))
        f = jax.nn.sigmoid(gx[1] + jnp.dot(hb, w_f, preferred_element_type=jnp.float32))
        g = jnp.tanh(gx[2] + jnp.dot(hb, w_g, preferred_element_type=jnp.float32))
        o = jax.nn.sigmoid(gx[3] + jnp.dot(hb, w_o, preferred_element_type=jnp.float32))
        c = f * c_prev + i * g
        h = o * jnp.tanh(c)
        h_out_ref[u] = h.astype(h_out_ref.dtype)
        return (h, c)

    h_last, c_last = lax.fori_loop(0, U, step, (h_scr[...], c_scr[...]),
                                   unroll=True)
    h_scr[...] = h_last
    c_scr[...] = c_last


def _lstm_recurrence(gx, w_hh_dev, *, hidden, u, nb, bb, flat):
    """Grid = (batch blocks, time blocks).  Batch axis is 'parallel' (feeds v7x's
    second TensorCore when B >= 16); time axis is 'arbitrary' (serial dependence
    carried through VMEM h/c scratch)."""
    t_pad = gx.shape[0]
    b_pad = nb * bb
    if flat:
        kernel = functools.partial(_lstm_recurrent_flat_kernel, hidden=hidden)
        gx_spec = pl.BlockSpec((u, bb, 4 * hidden), lambda b, t: (t, b, 0))
        w_spec = pl.BlockSpec((hidden, 4 * hidden), lambda b, t: (0, 0))
    else:
        kernel = _lstm_recurrent_gated_kernel
        gx_spec = pl.BlockSpec((u, 4, bb, hidden), lambda b, t: (t, 0, b, 0))
        w_spec = pl.BlockSpec((4, hidden, hidden), lambda b, t: (0, 0, 0))
    # W_hh has a constant index_map (fetched once per core); bf16 halves its
    # double-buffered VMEM footprint, keeping large-H configs inside v7x's 64 MiB.
    return pl.pallas_call(
        kernel,
        out_shape=jax.ShapeDtypeStruct((t_pad, b_pad, hidden), jnp.float32),
        grid_spec=pltpu.PrefetchScalarGridSpec(
            num_scalar_prefetch=0,
            grid=(nb, t_pad // u),
            in_specs=[gx_spec, w_spec],
            out_specs=pl.BlockSpec((u, bb, hidden), lambda b, t: (t, b, 0)),
            scratch_shapes=[
                pltpu.VMEM((bb, hidden), jnp.float32),   # h state
                pltpu.VMEM((bb, hidden), jnp.float32),   # c state
            ],
        ),
        compiler_params=pltpu.CompilerParams(
            dimension_semantics=("parallel", "arbitrary"),
            vmem_limit_bytes=VMEM_LIMIT_BYTES,
        ),
    )(gx, w_hh_dev)


# --------------------------------------------------------------------------
# Forward pass matching DecoderRNN.forward.
# --------------------------------------------------------------------------
@jax.jit
def decoder_rnn_forward(features, captions, params):
    """features: (B, E) f32; captions: (B, Tc) int32 -> logits (B, Tc, V) f32."""
    emb_table = params["embedding"]        # (V, E)
    w_ih = params["w_ih"]                  # (E, 4H), gate order i,f,g,o
    w_hh = params["w_hh"]                  # (H, 4H)
    b = params["b"]                        # (1, 4H)  == b_ih + b_hh
    w_fc = params["w_fc"]                  # (H, V)
    b_fc = params["b_fc"]                  # (1, V)

    B, E = features.shape
    H = w_hh.shape[0]
    V = w_fc.shape[1]

    # --- glue: embedding gather + concat, go time-major ---------------------
    cap_emb = jnp.take(emb_table, captions[:, :-1], axis=0)         # (B, Tc-1, E)
    seq = jnp.concatenate([features[:, None, :], cap_emb], axis=1)  # (B, T, E)
    T = seq.shape[1]
    x_tbe = jnp.transpose(seq, (1, 0, 2))                           # (T, B, E)  (E-sized, cheap)

    # Time block: whole sequence per grid step when it fits (amortize overhead).
    U = T if T <= MAX_TIME_BLOCK else MAX_TIME_BLOCK
    T_pad = _round_up(T, U)

    # Batch padding; split into 2 batch blocks when B >= 16 so the 'parallel'
    # batch axis can shard the recurrence across v7x's two TensorCores.
    B_min = _round_up(B, 8)
    if B_min >= 16:
        nb = 2
        bb = _round_up(-(-B_min // 2), 8)
    else:
        nb = 1
        bb = B_min
    B_pad = nb * bb

    x_tbe = jnp.pad(x_tbe, ((0, T_pad - T), (0, B_pad - B), (0, 0)))
    x_flat = x_tbe.reshape(T_pad * B_pad, E)

    flat_gates = (H % 128 == 0)

    # --- stage 1: input projection (parallel, lifted out of the recurrence) --
    if flat_gates:
        gx = _matmul_bias(x_flat, w_ih, b).reshape(T_pad, B_pad, 4 * H)
        w_hh_dev = w_hh.astype(RECUR_DTYPE)                            # (H, 4H)
    else:
        # Per-gate weight views (weight-sized reshapes only, no activation transpose).
        w_ih_g = jnp.transpose(w_ih.reshape(E, 4, H), (1, 0, 2))       # (4, E, H)
        b_g = jnp.transpose(b.reshape(1, 4, H), (1, 0, 2))             # (4, 1, H)
        gx = _input_proj_per_gate(x_flat, w_ih_g, b_g, t_pad=T_pad, b_pad=B_pad)
        w_hh_dev = jnp.transpose(w_hh.reshape(H, 4, H),
                                 (1, 0, 2)).astype(RECUR_DTYPE)        # (4, H, H)

    # --- stage 2: sequential recurrence --------------------------------------
    h_seq = _lstm_recurrence(gx, w_hh_dev, hidden=H, u=U, nb=nb, bb=bb,
                             flat=flat_gates)                           # (T_pad, B_pad, H)

    # --- stage 3: FC projection ----------------------------------------------
    # Fix layout on h (T,B,H)->(B,T,H): ~V/H times less HBM traffic than
    # transposing the vocab-sized logits afterwards; FC emits (B,T,V) directly.
    h_bth = jnp.transpose(h_seq[:T, :B], (1, 0, 2))                     # (B, T, H)
    logits = _matmul_bias(h_bth.reshape(B * T, H), w_fc, b_fc)          # (B*T, V)
    return logits.reshape(B, T, V)


# --------------------------------------------------------------------------
# Pure-JAX f32 reference (mirrors PyTorch nn.LSTM semantics) for sanity checks.
# --------------------------------------------------------------------------
def _reference_forward(features, captions, params):
    emb_table = params["embedding"]
    w_ih, w_hh, b = params["w_ih"], params["w_hh"], params["b"]
    w_fc, b_fc = params["w_fc"], params["b_fc"]
    B, _ = features.shape
    H = w_hh.shape[0]

    cap_emb = jnp.take(emb_table, captions[:, :-1], axis=0)
    seq = jnp.concatenate([features[:, None, :], cap_emb], axis=1)  # (B, T, E)
    T = seq.shape[1]

    h = jnp.zeros((B, H), jnp.float32)
    c = jnp.zeros((B, H), jnp.float32)
    outs = []
    for t in range(T):
        gates = seq[:, t, :] @ w_ih + h @ w_hh + b
        i = jax.nn.sigmoid(gates[:, 0 * H:1 * H])
        f = jax.nn.sigmoid(gates[:, 1 * H:2 * H])
        g = jnp.tanh(gates[:, 2 * H:3 * H])
        o = jax.nn.sigmoid(gates[:, 3 * H:4 * H])
        c = f * c + i * g
        h = o * jnp.tanh(c)
        outs.append(h @ w_fc + b_fc)
    return jnp.stack(outs, axis=1)   # (B, T, V)


def init_params(key, embed_size, hidden_size, vocab_size):
    """Deterministic synthetic parameters mirroring the module's shapes."""
    ks = jax.random.split(key, 6)
    k = 1.0 / jnp.sqrt(hidden_size)
    u = lambda kk, shape: jax.random.uniform(kk, shape, jnp.float32, -k, k)
    return {
        # nn.Embedding(vocab_size, embed_size)
        "embedding": jax.random.normal(ks[0], (vocab_size, embed_size), jnp.float32),
        # nn.LSTM weight_ih (4H, E) -> stored (E, 4H), gate order i,f,g,o
        "w_ih": u(ks[1], (embed_size, 4 * hidden_size)),
        # nn.LSTM weight_hh (4H, H) -> stored (H, 4H)
        "w_hh": u(ks[2], (hidden_size, 4 * hidden_size)),
        # b_ih + b_hh combined
        "b": u(ks[3], (1, 4 * hidden_size)),
        # nn.Linear(hidden_size, vocab_size): weight (V, H) -> stored (H, V)
        "w_fc": u(ks[4], (hidden_size, vocab_size)),
        "b_fc": u(ks[5], (1, vocab_size)),
    }


if __name__ == "__main__":
    def _run_case(name, key, *, embed, hidden, vocab, batch, cap_len):
        kp, kf, kc = jax.random.split(key, 3)
        params = init_params(kp, embed, hidden, vocab)
        features = jax.random.normal(kf, (batch, embed), jnp.float32)
        captions = jax.random.randint(kc, (batch, cap_len), 0, vocab, jnp.int32)

        logits = decoder_rnn_forward(features, captions, params)
        jax.block_until_ready(logits)
        assert logits.shape == (batch, cap_len, vocab), (name, logits.shape)
        assert logits.dtype == jnp.float32

        ref = _reference_forward(features, captions, params)
        err = float(jnp.max(jnp.abs(logits - ref)))
        # bf16 MXU operands (f32 accumulation) -> bf16-class error vs f32 reference.
        assert err < 1e-1, f"{name}: max abs err vs reference = {err}"

    root = jax.random.PRNGKey(0)
    k_small, k_aligned = jax.random.split(root, 2)

    # Small-H config: exercises the per-gate (T,4,B,H) path (H < 128).
    _run_case("small_h", k_small, embed=32, hidden=32, vocab=128, batch=2, cap_len=8)
    # Lane-aligned config: exercises the flat (T,B,4H) single-matmul-per-step path.
    _run_case("lane_aligned", k_aligned, embed=64, hidden=128, vocab=256,
              batch=2, cap_len=10)

    # TODO(synk): DecoderRNN.sample() (greedy autoregressive decode) is host-side
    # Python control flow in the original module and is not implemented here.
    print("KERNEL_OK")
</pallas_src>

<mosaic_0001>
module attributes {stable_mosaic.version = 11 : i64} {
  func.func @_input_proj_gate_kernel(%arg0: i32, %arg1: i32, %arg2: memref<64x32xbf16, #tpu.memory_space<vmem>>, %arg3: memref<1x32x32xbf16, #tpu.memory_space<vmem>>, %arg4: memref<1x1x32xf32, #tpu.memory_space<vmem>>, %arg5: memref<8x1x8x32xf32, #tpu.memory_space<vmem>>) attributes {dimension_semantics = [#tpu.dimension_semantics<parallel>, #tpu.dimension_semantics<parallel>], iteration_bounds = array<i64: 1, 4>, scalar_prefetch = 0 : i64, scratch_operands = 0 : i64, tpu.core_type = #tpu.core_type<tc>, window_params = [{transform_indices = @transform_0, window_bounds = array<i64: 64, 32>}, {transform_indices = @transform_1, window_bounds = array<i64: 1, 32, 32>}, {transform_indices = @transform_2, window_bounds = array<i64: 1, 1, 32>}, {transform_indices = @transform_3, window_bounds = array<i64: 8, 1, 8, 32>}]} {
    %c0 = arith.constant 0 : index
    %c0_0 = arith.constant 0 : index
    %0 = vector.load %arg2[%c0, %c0_0] : memref<64x32xbf16, #tpu.memory_space<vmem>>, vector<64x32xbf16>
    %c0_1 = arith.constant 0 : index
    %c0_2 = arith.constant 0 : index
    %c0_3 = arith.constant 0 : index
    %1 = vector.load %arg3[%c0_1, %c0_2, %c0_3] : memref<1x32x32xbf16, #tpu.memory_space<vmem>>, vector<1x32x32xbf16>
    %2 = vector.shape_cast %1 : vector<1x32x32xbf16> to vector<32x32xbf16>
    %cst = arith.constant dense<0.000000e+00> : vector<64x32xf32>
    %3 = tpu.matmul %0, %2, %cst {dimension_numbers = #tpu.dot_dimension_numbers<[1], [0], [0], [1], [0, 0, 1, 1], [], []>} : vector<64x32xbf16>, vector<32x32xbf16>, vector<64x32xf32> -> vector<64x32xf32>
    %c0_4 = arith.constant 0 : index
    %c0_5 = arith.constant 0 : index
    %c0_6 = arith.constant 0 : index
    %4 = vector.load %arg4[%c0_4, %c0_5, %c0_6] : memref<1x1x32xf32, #tpu.memory_space<vmem>>, vector<1x1x32xf32>
    %5 = vector.shape_cast %4 : vector<1x1x32xf32> to vector<1x32xf32>
    %6 = vector.broadcast %5 : vector<1x32xf32> to vector<64x32xf32>
    %7 = arith.addf %3, %6 : vector<64x32xf32>
    %8 = vector.shape_cast %7 : vector<64x32xf32> to vector<8x1x8x32xf32>
    %c0_7 = arith.constant 0 : index
    %c0_8 = arith.constant 0 : index
    %c0_9 = arith.constant 0 : index
    %c0_10 = arith.constant 0 : index
    %9 = vector.load %arg5[%c0_7, %c0_8, %c0_9, %c0_10] : memref<8x1x8x32xf32, #tpu.memory_space<vmem>>, vector<8x1x8x32xf32>
    tpu.vector_store %arg5[%c0_7, %c0_8, %c0_9, %c0_10], %8 {strides = array<i32>} : memref<8x1x8x32xf32, #tpu.memory_space<vmem>>, vector<8x1x8x32xf32>,
    return
  }
  func.func @transform_0(%arg0: i32, %arg1: i32) -> (i32, i32) {
    %c0_i32 = arith.constant 0 : i32
    %c0_i32_0 = arith.constant 0 : i32
    return %arg0, %c0_i32 : i32, i32
  }
  func.func @transform_1(%arg0: i32, %arg1: i32) -> (i32, i32, i32) {
    %c0_i32 = arith.constant 0 : i32
    %c0_i32_0 = arith.constant 0 : i32
    %c0_i32_1 = arith.constant 0 : i32
    return %arg1, %c0_i32, %c0_i32_0 : i32, i32, i32
  }
  func.func @transform_2(%arg0: i32, %arg1: i32) -> (i32, i32, i32) {
    %c0_i32 = arith.constant 0 : i32
    %c0_i32_0 = arith.constant 0 : i32
    %c0_i32_1 = arith.constant 0 : i32
    return %arg1, %c0_i32, %c0_i32_0 : i32, i32, i32
  }
  func.func @transform_3(%arg0: i32, %arg1: i32) -> (i32, i32, i32, i32) {
    %c0_i32 = arith.constant 0 : i32
    %c0_i32_0 = arith.constant 0 : i32
    %c0_i32_1 = arith.constant 0 : i32
    return %arg0, %arg1, %c0_i32, %c0_i32_0 : i32, i32, i32, i32
  }
}

module attributes {stable_mosaic.version = 11 : i64} {
  func.func @_matmul_bias_kernel(%arg0: i32, %arg1: i32, %arg2: memref<16x32xbf16, #tpu.memory_space<vmem>>, %arg3: memref<32x128xbf16, #tpu.memory_space<vmem>>, %arg4: memref<1x128xf32, #tpu.memory_space<vmem>>, %arg5: memref<16x128xf32, #tpu.memory_space<vmem>>) attributes {dimension_semantics = [#tpu.dimension_semantics<parallel>, #tpu.dimension_semantics<parallel>], iteration_bounds = array<i64: 1, 1>, scalar_prefetch = 0 : i64, scratch_operands = 0 : i64, tpu.core_type = #tpu.core_type<tc>, window_params = [{transform_indices = @transform_0, window_bounds = array<i64: 16, 32>}, {transform_indices = @transform_1, window_bounds = array<i64: 32, 128>}, {transform_indices = @transform_2, window_bounds = array<i64: 1, 128>}, {transform_indices = @transform_3, window_bounds = array<i64: 16, 128>}]} {
    %c0 = arith.constant 0 : index
    %c0_0 = arith.constant 0 : index
    %0 = vector.load %arg2[%c0, %c0_0] : memref<16x32xbf16, #tpu.memory_space<vmem>>, vector<16x32xbf16>
    %c0_1 = arith.constant 0 : index
    %c0_2 = arith.constant 0 : index
    %1 = vector.load %arg3[%c0_1, %c0_2] : memref<32x128xbf16, #tpu.memory_space<vmem>>, vector<32x128xbf16>
    %cst = arith.constant dense<0.000000e+00> : vector<16x128xf32>
    %2 = tpu.matmul %0, %1, %cst {dimension_numbers = #tpu.dot_dimension_numbers<[1], [0], [0], [1], [0, 0, 1, 1], [], []>} : vector<16x32xbf16>, vector<32x128xbf16>, vector<16x128xf32> -> vector<16x128xf32>
    %c0_3 = arith.constant 0 : index
    %c0_4 = arith.constant 0 : index
    %3 = vector.load %arg4[%c0_3, %c0_4] : memref<1x128xf32, #tpu.memory_space<vmem>>, vector<1x128xf32>
    %4 = vector.broadcast %3 : vector<1x128xf32> to vector<16x128xf32>
    %5 = arith.addf %2, %4 : vector<16x128xf32>
    %c0_5 = arith.constant 0 : index
    %c0_6 = arith.constant 0 : index
    %6 = vector.load %arg5[%c0_5, %c0_6] : memref<16x128xf32, #tpu.memory_space<vmem>>, vector<16x128xf32>
    tpu.vector_store %arg5[%c0_5, %c0_6], %5 {strides = array<i32>} : memref<16x128xf32, #tpu.memory_space<vmem>>, vector<16x128xf32>,
    return
  }
  func.func @transform_0(%arg0: i32, %arg1: i32) -> (i32, i32) {
    %c0_i32 = arith.constant 0 : i32
    %c0_i32_0 = arith.constant 0 : i32
    return %arg0, %c0_i32 : i32, i32
  }
  func.func @transform_1(%arg0: i32, %arg1: i32) -> (i32, i32) {
    %c0_i32 = arith.constant 0 : i32
    %c0_i32_0 = arith.constant 0 : i32
    return %c0_i32, %arg1 : i32, i32
  }
  func.func @transform_2(%arg0: i32, %arg1: i32) -> (i32, i32) {
    %c0_i32 = arith.constant 0 : i32
    %c0_i32_0 = arith.constant 0 : i32
    return %c0_i32, %arg1 : i32, i32
  }
  func.func @transform_3(%arg0: i32, %arg1: i32) -> (i32, i32) {
    %c0_i32 = arith.constant 0 : i32
    return %arg0, %arg1 : i32, i32
  }
}

module attributes {stable_mosaic.version = 11 : i64} {
  func.func @_lstm_recurrent_gated_kernel(%arg0: i32, %arg1: i32, %arg2: memref<8x4x8x32xf32, #tpu.memory_space<vmem>>, %arg3: memref<4x32x32xbf16, #tpu.memory_space<vmem>>, %arg4: memref<8x8x32xf32, #tpu.memory_space<vmem>>, %arg5: memref<8x32xf32, #tpu.memory_space<vmem>>, %arg6: memref<8x32xf32, #tpu.memory_space<vmem>>) attributes {dimension_semantics = [#tpu.dimension_semantics<parallel>, #tpu.dimension_semantics<arbitrary>], iteration_bounds = array<i64: 1, 1>, scalar_prefetch = 0 : i64, scratch_operands = 2 : i64, tpu.core_type = #tpu.core_type<tc>, window_params = [{transform_indices = @transform_0, window_bounds = array<i64: 8, 4, 8, 32>}, {pipeline_mode = #tpu.pipeline_mode<synchronous>, transform_indices = @transform_1, window_bounds = array<i64: 4, 32, 32>}, {transform_indices = @transform_2, window_bounds = array<i64: 8, 8, 32>}]} {
    %c0_i32 = arith.constant 0 : i32
    %0 = arith.cmpi eq, %arg1, %c0_i32 : i32
    %1 = arith.extui %0 : i1 to i32
    %c0_i32_0 = arith.constant 0 : i32
    %2 = arith.cmpi ne, %1, %c0_i32_0 : i32
    scf.if %2 {
      %cst_113 = arith.constant 0.000000e+00 : f32
      %375 = vector.broadcast %cst_113 : f32 to vector<8x32xf32>
      %c0_114 = arith.constant 0 : index
      %c0_115 = arith.constant 0 : index
      %376 = vector.load %arg5[%c0_114, %c0_115] : memref<8x32xf32, #tpu.memory_space<vmem>>, vector<8x32xf32>
      tpu.vector_store %arg5[%c0_114, %c0_115], %375 {strides = array<i32>} : memref<8x32xf32, #tpu.memory_space<vmem>>, vector<8x32xf32>,
      %cst_116 = arith.constant 0.000000e+00 : f32
      %377 = vector.broadcast %cst_116 : f32 to vector<8x32xf32>
      %c0_117 = arith.constant 0 : index
      %c0_118 = arith.constant 0 : index
      %378 = vector.load %arg6[%c0_117, %c0_118] : memref<8x32xf32, #tpu.memory_space<vmem>>, vector<8x32xf32>
      tpu.vector_store %arg6[%c0_117, %c0_118], %377 {strides = array<i32>} : memref<8x32xf32, #tpu.memory_space<vmem>>, vector<8x32xf32>,
    } else {
    }
    %c0 = arith.constant 0 : index
    %c0_1 = arith.constant 0 : index
    %c0_2 = arith.constant 0 : index
    %3 = vector.load %arg3[%c0, %c0_1, %c0_2] : memref<4x32x32xbf16, #tpu.memory_space<vmem>>, vector<1x32x32xbf16>
    %4 = vector.shape_cast %3 : vector<1x32x32xbf16> to vector<32x32xbf16>
    %c1 = arith.constant 1 : index
    %c0_3 = arith.constant 0 : index
    %c0_4 = arith.constant 0 : index
    %5 = vector.load %arg3[%c1, %c0_3, %c0_4] : memref<4x32x32xbf16, #tpu.memory_space<vmem>>, vector<1x32x32xbf16>
    %6 = vector.shape_cast %5 : vector<1x32x32xbf16> to vector<32x32xbf16>
    %c2 = arith.constant 2 : index
    %c0_5 = arith.constant 0 : index
    %c0_6 = arith.constant 0 : index
    %7 = vector.load %arg3[%c2, %c0_5, %c0_6] : memref<4x32x32xbf16, #tpu.memory_space<vmem>>, vector<1x32x32xbf16>
    %8 = vector.shape_cast %7 : vector<1x32x32xbf16> to vector<32x32xbf16>
    %c3 = arith.constant 3 : index
    %c0_7 = arith.constant 0 : index
    %c0_8 = arith.constant 0 : index
    %9 = vector.load %arg3[%c3, %c0_7, %c0_8] : memref<4x32x32xbf16, #tpu.memory_space<vmem>>, vector<1x32x32xbf16>
    %10 = vector.shape_cast %9 : vector<1x32x32xbf16> to vector<32x32xbf16>
    %c0_9 = arith.constant 0 : index
    %c0_10 = arith.constant 0 : index
    %11 = vector.load %arg5[%c0_9, %c0_10] : memref<8x32xf32, #tpu.memory_space<vmem>>, vector<8x32xf32>
    %c0_11 = arith.constant 0 : index
    %c0_12 = arith.constant 0 : index
    %12 = vector.load %arg6[%c0_11, %c0_12] : memref<8x32xf32, #tpu.memory_space<vmem>>, vector<8x32xf32>
    %c0_i32_13 = arith.constant 0 : i32
    %13 = arith.truncf %11 : vector<8x32xf32> to vector<8x32xbf16>
    %14 = arith.index_cast %c0_i32_13 : i32 to index
    %c0_14 = arith.constant 0 : index
    %c0_15 = arith.constant 0 : index
    %c0_16 = arith.constant 0 : index
    %15 = vector.load %arg2[%14, %c0_14, %c0_15, %c0_16] : memref<8x4x8x32xf32, #tpu.memory_space<vmem>>, vector<1x4x8x32xf32>
    %16 = vector.shape_cast %15 : vector<1x4x8x32xf32> to vector<4x8x32xf32>
    %17 = vector.extract_strided_slice %16 {offsets = [0, 0, 0], sizes = [1, 8, 32], strides = [1, 1, 1]} : vector<4x8x32xf32> to vector<1x8x32xf32>
    %18 = vector.shape_cast %17 : vector<1x8x32xf32> to vector<8x32xf32>
    %cst = arith.constant dense<0.000000e+00> : vector<8x32xf32>
    %19 = tpu.matmul %13, %4, %cst {dimension_numbers = #tpu.dot_dimension_numbers<[1], [0], [0], [1], [0, 0, 1, 1], [], []>} : vector<8x32xbf16>, vector<32x32xbf16>, vector<8x32xf32> -> vector<8x32xf32>
    %20 = arith.addf %18, %19 : vector<8x32xf32>
    %21 = arith.negf %20 : vector<8x32xf32>
    %22 = math.exp %21 : vector<8x32xf32>
    %cst_17 = arith.constant 1.000000e+00 : f32
    %23 = vector.broadcast %cst_17 : f32 to vector<8x32xf32>
    %24 = arith.addf %23, %22 : vector<8x32xf32>
    %25 = arith.divf %23, %24 : vector<8x32xf32>
    %26 = vector.extract_strided_slice %16 {offsets = [1, 0, 0], sizes = [1, 8, 32], strides = [1, 1, 1]} : vector<4x8x32xf32> to vector<1x8x32xf32>
    %27 = vector.shape_cast %26 : vector<1x8x32xf32> to vector<8x32xf32>
    %cst_18 = arith.constant dense<0.000000e+00> : vector<8x32xf32>
    %28 = tpu.matmul %13, %6, %cst_18 {dimension_numbers = #tpu.dot_dimension_numbers<[1], [0], [0], [1], [0, 0, 1, 1], [], []>} : vector<8x32xbf16>, vector<32x32xbf16>, vector<8x32xf32> -> vector<8x32xf32>
    %29 = arith.addf %27, %28 : vector<8x32xf32>
    %30 = arith.negf %29 : vector<8x32xf32>
    %31 = math.exp %30 : vector<8x32xf32>
    %cst_19 = arith.constant 1.000000e+00 : f32
    %32 = vector.broadcast %cst_19 : f32 to vector<8x32xf32>
    %33 = arith.addf %32, %31 : vector<8x32xf32>
    %34 = arith.divf %32, %33 : vector<8x32xf32>
    %35 = vector.extract_strided_slice %16 {offsets = [2, 0, 0], sizes = [1, 8, 32], strides = [1, 1, 1]} : vector<4x8x32xf32> to vector<1x8x32xf32>
    %36 = vector.shape_cast %35 : vector<1x8x32xf32> to vector<8x32xf32>
    %cst_20 = arith.constant dense<0.000000e+00> : vector<8x32xf32>
    %37 = tpu.matmul %13, %8, %cst_20 {dimension_numbers = #tpu.dot_dimension_numbers<[1], [0], [0], [1], [0, 0, 1, 1], [], []>} : vector<8x32xbf16>, vector<32x32xbf16>, vector<8x32xf32> -> vector<8x32xf32>
    %38 = arith.addf %36, %37 : vector<8x32xf32>
    %39 = math.tanh %38 : vector<8x32xf32>
    %40 = vector.extract_strided_slice %16 {offsets = [3, 0, 0], sizes = [1, 8, 32], strides = [1, 1, 1]} : vector<4x8x32xf32> to vector<1x8x32xf32>
    %41 = vector.shape_cast %40 : vector<1x8x32xf32> to vector<8x32xf32>
    %cst_21 = arith.constant dense<0.000000e+00> : vector<8x32xf32>
    %42 = tpu.matmul %13, %10, %cst_21 {dimension_numbers = #tpu.dot_dimension_numbers<[1], [0], [0], [1], [0, 0, 1, 1], [], []>} : vector<8x32xbf16>, vector<32x32xbf16>, vector<8x32xf32> -> vector<8x32xf32>
    %43 = arith.addf %41, %42 : vector<8x32xf32>
    %44 = arith.negf %43 : vector<8x32xf32>
    %45 = math.exp %44 : vector<8x32xf32>
    %cst_22 = arith.constant 1.000000e+00 : f32
    %46 = vector.broadcast %cst_22 : f32 to vector<8x32xf32>
    %47 = arith.addf %46, %45 : vector<8x32xf32>
    %48 = arith.divf %46, %47 : vector<8x32xf32>
    %49 = arith.mulf %34, %12 : vector<8x32xf32>
    %50 = arith.mulf %25, %39 : vector<8x32xf32>
    %51 = arith.addf %49, %50 : vector<8x32xf32>
    %52 = math.tanh %51 : vector<8x32xf32>
    %53 = arith.mulf %48, %52 : vector<8x32xf32>
    %54 = arith.index_cast %c0_i32_13 : i32 to index
    %c0_23 = arith.constant 0 : index
    %c0_24 = arith.constant 0 : index
    %55 = vector.load %arg4[%54, %c0_23, %c0_24] : memref<8x8x32xf32, #tpu.memory_space<vmem>>, vector<1x8x32xf32>
    %56 = vector.shape_cast %55 : vector<1x8x32xf32> to vector<8x32xf32>
    %57 = vector.shape_cast %53 : vector<8x32xf32> to vector<1x8x32xf32>
    tpu.vector_store %arg4[%54, %c0_23, %c0_24], %57 {strides = array<i32>} : memref<8x8x32xf32, #tpu.memory_space<vmem>>, vector<1x8x32xf32>,
    %c1_i32 = arith.constant 1 : i32
    %58 = arith.truncf %53 : vector<8x32xf32> to vector<8x32xbf16>
    %59 = arith.index_cast %c1_i32 : i32 to index
    %c0_25 = arith.constant 0 : index
    %c0_26 = arith.constant 0 : index
    %c0_27 = arith.constant 0 : index
    %60 = vector.load %arg2[%59, %c0_25, %c0_26, %c0_27] : memref<8x4x8x32xf32, #tpu.memory_space<vmem>>, vector<1x4x8x32xf32>
    %61 = vector.shape_cast %60 : vector<1x4x8x32xf32> to vector<4x8x32xf32>
    %62 = vector.extract_strided_slice %61 {offsets = [0, 0, 0], sizes = [1, 8, 32], strides = [1, 1, 1]} : vector<4x8x32xf32> to vector<1x8x32xf32>
    %63 = vector.shape_cast %62 : vector<1x8x32xf32> to vector<8x32xf32>
    %cst_28 = arith.constant dense<0.000000e+00> : vector<8x32xf32>
    %64 = tpu.matmul %58, %4, %cst_28 {dimension_numbers = #tpu.dot_dimension_numbers<[1], [0], [0], [1], [0, 0, 1, 1], [], []>} : vector<8x32xbf16>, vector<32x32xbf16>, vector<8x32xf32> -> vector<8x32xf32>
    %65 = arith.addf %63, %64 : vector<8x32xf32>
    %66 = arith.negf %65 : vector<8x32xf32>
    %67 = math.exp %66 : vector<8x32xf32>
    %cst_29 = arith.constant 1.000000e+00 : f32
    %68 = vector.broadcast %cst_29 : f32 to vector<8x32xf32>
    %69 = arith.addf %68, %67 : vector<8x32xf32>
    %70 = arith.divf %68, %69 : vector<8x32xf32>
    %71 = vector.extract_strided_slice %61 {offsets = [1, 0, 0], sizes = [1, 8, 32], strides = [1, 1, 1]} : vector<4x8x32xf32> to vector<1x8x32xf32>
    %72 = vector.shape_cast %71 : vector<1x8x32xf32> to vector<8x32xf32>
    %cst_30 = arith.constant dense<0.000000e+00> : vector<8x32xf32>
    %73 = tpu.matmul %58, %6, %cst_30 {dimension_numbers = #tpu.dot_dimension_numbers<[1], [0], [0], [1], [0, 0, 1, 1], [], []>} : vector<8x32xbf16>, vector<32x32xbf16>, vector<8x32xf32> -> vector<8x32xf32>
    %74 = arith.addf %72, %73 : vector<8x32xf32>
    %75 = arith.negf %74 : vector<8x32xf32>
    %76 = math.exp %75 : vector<8x32xf32>
    %cst_31 = arith.constant 1.000000e+00 : f32
    %77 = vector.broadcast %cst_31 : f32 to vector<8x32xf32>
    %78 = arith.addf %77, %76 : vector<8x32xf32>
    %79 = arith.divf %77, %78 : vector<8x32xf32>
    %80 = vector.extract_strided_slice %61 {offsets = [2, 0, 0], sizes = [1, 8, 32], strides = [1, 1, 1]} : vector<4x8x32xf32> to vector<1x8x32xf32>
    %81 = vector.shape_cast %80 : vector<1x8x32xf32> to vector<8x32xf32>
    %cst_32 = arith.constant dense<0.000000e+00> : vector<8x32xf32>
    %82 = tpu.matmul %58, %8, %cst_32 {dimension_numbers = #tpu.dot_dimension_numbers<[1], [0], [0], [1], [0, 0, 1, 1], [], []>} : vector<8x32xbf16>, vector<32x32xbf16>, vector<8x32xf32> -> vector<8x32xf32>
    %83 = arith.addf %81, %82 : vector<8x32xf32>
    %84 = math.tanh %83 : vector<8x32xf32>
    %85 = vector.extract_strided_slice %61 {offsets = [3, 0, 0], sizes = [1, 8, 32], strides = [1, 1, 1]} : vector<4x8x32xf32> to vector<1x8x32xf32>
    %86 = vector.shape_cast %85 : vector<1x8x32xf32> to vector<8x32xf32>
    %cst_33 = arith.constant dense<0.000000e+00> : vector<8x32xf32>
    %87 = tpu.matmul %58, %10, %cst_33 {dimension_numbers = #tpu.dot_dimension_numbers<[1], [0], [0], [1], [0, 0, 1, 1], [], []>} : vector<8x32xbf16>, vector<32x32xbf16>, vector<8x32xf32> -> vector<8x32xf32>
    %88 = arith.addf %86, %87 : vector<8x32xf32>
    %89 = arith.negf %88 : vector<8x32xf32>
    %90 = math.exp %89 : vector<8x32xf32>
    %cst_34 = arith.constant 1.000000e+00 : f32
    %91 = vector.broadcast %cst_34 : f32 to vector<8x32xf32>
    %92 = arith.addf %91, %90 : vector<8x32xf32>
    %93 = arith.divf %91, %92 : vector<8x32xf32>
    %94 = arith.mulf %79, %51 : vector<8x32xf32>
    %95 = arith.mulf %70, %84 : vector<8x32xf32>
    %96 = arith.addf %94, %95 : vector<8x32xf32>
    %97 = math.tanh %96 : vector<8x32xf32>
    %98 = arith.mulf %93, %97 : vector<8x32xf32>
    %99 = arith.index_cast %c1_i32 : i32 to index
    %c0_35 = arith.constant 0 : index
    %c0_36 = arith.constant 0 : index
    %100 = vector.load %arg4[%99, %c0_35, %c0_36] : memref<8x8x32xf32, #tpu.memory_space<vmem>>, vector<1x8x32xf32>
    %101 = vector.shape_cast %100 : vector<1x8x32xf32> to vector<8x32xf32>
    %102 = vector.shape_cast %98 : vector<8x32xf32> to vector<1x8x32xf32>
    tpu.vector_store %arg4[%99, %c0_35, %c0_36], %102 {strides = array<i32>} : memref<8x8x32xf32, #tpu.memory_space<vmem>>, vector<1x8x32xf32>,
    %c2_i32 = arith.constant 2 : i32
    %103 = arith.truncf %98 : vector<8x32xf32> to vector<8x32xbf16>
    %104 = arith.index_cast %c2_i32 : i32 to index
    %c0_37 = arith.constant 0 : index
    %c0_38 = arith.constant 0 : index
    %c0_39 = arith.constant 0 : index
    %105 = vector.load %arg2[%104, %c0_37, %c0_38, %c0_39] : memref<8x4x8x32xf32, #tpu.memory_space<vmem>>, vector<1x4x8x32xf32>
    %106 = vector.shape_cast %105 : vector<1x4x8x32xf32> to vector<4x8x32xf32>
    %107 = vector.extract_strided_slice %106 {offsets = [0, 0, 0], sizes = [1, 8, 32], strides = [1, 1, 1]} : vector<4x8x32xf32> to vector<1x8x32xf32>
    %108 = vector.shape_cast %107 : vector<1x8x32xf32> to vector<8x32xf32>
    %cst_40 = arith.constant dense<0.000000e+00> : vector<8x32xf32>
    %109 = tpu.matmul %103, %4, %cst_40 {dimension_numbers = #tpu.dot_dimension_numbers<[1], [0], [0], [1], [0, 0, 1, 1], [], []>} : vector<8x32xbf16>, vector<32x32xbf16>, vector<8x32xf32> -> vector<8x32xf32>
    %110 = arith.addf %108, %109 : vector<8x32xf32>
    %111 = arith.negf %110 : vector<8x32xf32>
    %112 = math.exp %111 : vector<8x32xf32>
    %cst_41 = arith.constant 1.000000e+00 : f32
    %113 = vector.broadcast %cst_41 : f32 to vector<8x32xf32>
    %114 = arith.addf %113, %112 : vector<8x32xf32>
    %115 = arith.divf %113, %114 : vector<8x32xf32>
    %116 = vector.extract_strided_slice %106 {offsets = [1, 0, 0], sizes = [1, 8, 32], strides = [1, 1, 1]} : vector<4x8x32xf32> to vector<1x8x32xf32>
    %117 = vector.shape_cast %116 : vector<1x8x32xf32> to vector<8x32xf32>
    %cst_42 = arith.constant dense<0.000000e+00> : vector<8x32xf32>
    %118 = tpu.matmul %103, %6, %cst_42 {dimension_numbers = #tpu.dot_dimension_numbers<[1], [0], [0], [1], [0, 0, 1, 1], [], []>} : vector<8x32xbf16>, vector<32x32xbf16>, vector<8x32xf32> -> vector<8x32xf32>
    %119 = arith.addf %117, %118 : vector<8x32xf32>
    %120 = arith.negf %119 : vector<8x32xf32>
    %121 = math.exp %120 : vector<8x32xf32>
    %cst_43 = arith.constant 1.000000e+00 : f32
    %122 = vector.broadcast %cst_43 : f32 to vector<8x32xf32>
    %123 = arith.addf %122, %121 : vector<8x32xf32>
    %124 = arith.divf %122, %123 : vector<8x32xf32>
    %125 = vector.extract_strided_slice %106 {offsets = [2, 0, 0], sizes = [1, 8, 32], strides = [1, 1, 1]} : vector<4x8x32xf32> to vector<1x8x32xf32>
    %126 = vector.shape_cast %125 : vector<1x8x32xf32> to vector<8x32xf32>
    %cst_44 = arith.constant dense<0.000000e+00> : vector<8x32xf32>
    %127 = tpu.matmul %103, %8, %cst_44 {dimension_numbers = #tpu.dot_dimension_numbers<[1], [0], [0], [1], [0, 0, 1, 1], [], []>} : vector<8x32xbf16>, vector<32x32xbf16>, vector<8x32xf32> -> vector<8x32xf32>
    %128 = arith.addf %126, %127 : vector<8x32xf32>
    %129 = math.tanh %128 : vector<8x32xf32>
    %130 = vector.extract_strided_slice %106 {offsets = [3, 0, 0], sizes = [1, 8, 32], strides = [1, 1, 1]} : vector<4x8x32xf32> to vector<1x8x32xf32>
    %131 = vector.shape_cast %130 : vector<1x8x32xf32> to vector<8x32xf32>
    %cst_45 = arith.constant dense<0.000000e+00> : vector<8x32xf32>
    %132 = tpu.matmul %103, %10, %cst_45 {dimension_numbers = #tpu.dot_dimension_numbers<[1], [0], [0], [1], [0, 0, 1, 1], [], []>} : vector<8x32xbf16>, vector<32x32xbf16>, vector<8x32xf32> -> vector<8x32xf32>
    %133 = arith.addf %131, %132 : vector<8x32xf32>
    %134 = arith.negf %133 : vector<8x32xf32>
    %135 = math.exp %134 : vector<8x32xf32>
    %cst_46 = arith.constant 1.000000e+00 : f32
    %136 = vector.broadcast %cst_46 : f32 to vector<8x32xf32>
    %137 = arith.addf %136, %135 : vector<8x32xf32>
    %138 = arith.divf %136, %137 : vector<8x32xf32>
    %139 = arith.mulf %124, %96 : vector<8x32xf32>
    %140 = arith.mulf %115, %129 : vector<8x32xf32>
    %141 = arith.addf %139, %140 : vector<8x32xf32>
    %142 = math.tanh %141 : vector<8x32xf32>
    %143 = arith.mulf %138, %142 : vector<8x32xf32>
    %144 = arith.index_cast %c2_i32 : i32 to index
    %c0_47 = arith.constant 0 : index
    %c0_48 = arith.constant 0 : index
    %145 = vector.load %arg4[%144, %c0_47, %c0_48] : memref<8x8x32xf32, #tpu.memory_space<vmem>>, vector<1x8x32xf32>
    %146 = vector.shape_cast %145 : vector<1x8x32xf32> to vector<8x32xf32>
    %147 = vector.shape_cast %143 : vector<8x32xf32> to vector<1x8x32xf32>
    tpu.vector_store %arg4[%144, %c0_47, %c0_48], %147 {strides = array<i32>} : memref<8x8x32xf32, #tpu.memory_space<vmem>>, vector<1x8x32xf32>,
    %c3_i32 = arith.constant 3 : i32
    %148 = arith.truncf %143 : vector<8x32xf32> to vector<8x32xbf16>
    %149 = arith.index_cast %c3_i32 : i32 to index
    %c0_49 = arith.constant 0 : index
    %c0_50 = arith.constant 0 : index
    %c0_51 = arith.constant 0 : index
    %150 = vector.load %arg2[%149, %c0_49, %c0_50, %c0_51] : memref<8x4x8x32xf32, #tpu.memory_space<vmem>>, vector<1x4x8x32xf32>
    %151 = vector.shape_cast %150 : vector<1x4x8x32xf32> to vector<4x8x32xf32>
    %152 = vector.extract_strided_slice %151 {offsets = [0, 0, 0], sizes = [1, 8, 32], strides = [1, 1, 1]} : vector<4x8x32xf32> to vector<1x8x32xf32>
    %153 = vector.shape_cast %152 : vector<1x8x32xf32> to vector<8x32xf32>
    %cst_52 = arith.constant dense<0.000000e+00> : vector<8x32xf32>
    %154 = tpu.matmul %148, %4, %cst_52 {dimension_numbers = #tpu.dot_dimension_numbers<[1], [0], [0], [1], [0, 0, 1, 1], [], []>} : vector<8x32xbf16>, vector<32x32xbf16>, vector<8x32xf32> -> vector<8x32xf32>
    %155 = arith.addf %153, %154 : vector<8x32xf32>
    %156 = arith.negf %155 : vector<8x32xf32>
    %157 = math.exp %156 : vector<8x32xf32>
    %cst_53 = arith.constant 1.000000e+00 : f32
    %158 = vector.broadcast %cst_53 : f32 to vector<8x32xf32>
    %159 = arith.addf %158, %157 : vector<8x32xf32>
    %160 = arith.divf %158, %159 : vector<8x32xf32>
    %161 = vector.extract_strided_slice %151 {offsets = [1, 0, 0], sizes = [1, 8, 32], strides = [1, 1, 1]} : vector<4x8x32xf32> to vector<1x8x32xf32>
    %162 = vector.shape_cast %161 : vector<1x8x32xf32> to vector<8x32xf32>
    %cst_54 = arith.constant dense<0.000000e+00> : vector<8x32xf32>
    %163 = tpu.matmul %148, %6, %cst_54 {dimension_numbers = #tpu.dot_dimension_numbers<[1], [0], [0], [1], [0, 0, 1, 1], [], []>} : vector<8x32xbf16>, vector<32x32xbf16>, vector<8x32xf32> -> vector<8x32xf32>
    %164 = arith.addf %162, %163 : vector<8x32xf32>
    %165 = arith.negf %164 : vector<8x32xf32>
    %166 = math.exp %165 : vector<8x32xf32>
    %cst_55 = arith.constant 1.000000e+00 : f32
    %167 = vector.broadcast %cst_55 : f32 to vector<8x32xf32>
    %168 = arith.addf %167, %166 : vector<8x32xf32>
    %169 = arith.divf %167, %168 : vector<8x32xf32>
    %170 = vector.extract_strided_slice %151 {offsets = [2, 0, 0], sizes = [1, 8, 32], strides = [1, 1, 1]} : vector<4x8x32xf32> to vector<1x8x32xf32>
    %171 = vector.shape_cast %170 : vector<1x8x32xf32> to vector<8x32xf32>
    %cst_56 = arith.constant dense<0.000000e+00> : vector<8x32xf32>
    %172 = tpu.matmul %148, %8, %cst_56 {dimension_numbers = #tpu.dot_dimension_numbers<[1], [0], [0], [1], [0, 0, 1, 1], [], []>} : vector<8x32xbf16>, vector<32x32xbf16>, vector<8x32xf32> -> vector<8x32xf32>
    %173 = arith.addf %171, %172 : vector<8x32xf32>
    %174 = math.tanh %173 : vector<8x32xf32>
    %175 = vector.extract_strided_slice %151 {offsets = [3, 0, 0], sizes = [1, 8, 32], strides = [1, 1, 1]} : vector<4x8x32xf32> to vector<1x8x32xf32>
    %176 = vector.shape_cast %175 : vector<1x8x32xf32> to vector<8x32xf32>
    %cst_57 = arith.constant dense<0.000000e+00> : vector<8x32xf32>
    %177 = tpu.matmul %148, %10, %cst_57 {dimension_numbers = #tpu.dot_dimension_numbers<[1], [0], [0], [1], [0, 0, 1, 1], [], []>} : vector<8x32xbf16>, vector<32x32xbf16>, vector<8x32xf32> -> vector<8x32xf32>
    %178 = arith.addf %176, %177 : vector<8x32xf32>
    %179 = arith.negf %178 : vector<8x32xf32>
    %180 = math.exp %179 : vector<8x32xf32>
    %cst_58 = arith.constant 1.000000e+00 : f32
    %181 = vector.broadcast %cst_58 : f32 to vector<8x32xf32>
    %182 = arith.addf %181, %180 : vector<8x32xf32>
    %183 = arith.divf %181, %182 : vector<8x32xf32>
    %184 = arith.mulf %169, %141 : vector<8x32xf32>
    %185 = arith.mulf %160, %174 : vector<8x32xf32>
    %186 = arith.addf %184, %185 : vector<8x32xf32>
    %187 = math.tanh %186 : vector<8x32xf32>
    %188 = arith.mulf %183, %187 : vector<8x32xf32>
    %189 = arith.index_cast %c3_i32 : i32 to index
    %c0_59 = arith.constant 0 : index
    %c0_60 = arith.constant 0 : index
    %190 = vector.load %arg4[%189, %c0_59, %c0_60] : memref<8x8x32xf32, #tpu.memory_space<vmem>>, vector<1x8x32xf32>
    %191 = vector.shape_cast %190 : vector<1x8x32xf32> to vector<8x32xf32>
    %192 = vector.shape_cast %188 : vector<8x32xf32> to vector<1x8x32xf32>
    tpu.vector_store %arg4[%189, %c0_59, %c0_60], %192 {strides = array<i32>} : memref<8x8x32xf32, #tpu.memory_space<vmem>>, vector<1x8x32xf32>,
    %c4_i32 = arith.constant 4 : i32
    %193 = arith.truncf %188 : vector<8x32xf32> to vector<8x32xbf16>
    %194 = arith.index_cast %c4_i32 : i32 to index
    %c0_61 = arith.constant 0 : index
    %c0_62 = arith.constant 0 : index
    %c0_63 = arith.constant 0 : index
    %195 = vector.load %arg2[%194, %c0_61, %c0_62, %c0_63] : memref<8x4x8x32xf32, #tpu.memory_space<vmem>>, vector<1x4x8x32xf32>
    %196 = vector.shape_cast %195 : vector<1x4x8x32xf32> to vector<4x8x32xf32>
    %197 = vector.extract_strided_slice %196 {offsets = [0, 0, 0], sizes = [1, 8, 32], strides = [1, 1, 1]} : vector<4x8x32xf32> to vector<1x8x32xf32>
    %198 = vector.shape_cast %197 : vector<1x8x32xf32> to vector<8x32xf32>
    %cst_64 = arith.constant dense<0.000000e+00> : vector<8x32xf32>
    %199 = tpu.matmul %193, %4, %cst_64 {dimension_numbers = #tpu.dot_dimension_numbers<[1], [0], [0], [1], [0, 0, 1, 1], [], []>} : vector<8x32xbf16>, vector<32x32xbf16>, vector<8x32xf32> -> vector<8x32xf32>
    %200 = arith.addf %198, %199 : vector<8x32xf32>
    %201 = arith.negf %200 : vector<8x32xf32>
    %202 = math.exp %201 : vector<8x32xf32>
    %cst_65 = arith.constant 1.000000e+00 : f32
    %203 = vector.broadcast %cst_65 : f32 to vector<8x32xf32>
    %204 = arith.addf %203, %202 : vector<8x32xf32>
    %205 = arith.divf %203, %204 : vector<8x32xf32>
    %206 = vector.extract_strided_slice %196 {offsets = [1, 0, 0], sizes = [1, 8, 32], strides = [1, 1, 1]} : vector<4x8x32xf32> to vector<1x8x32xf32>
    %207 = vector.shape_cast %206 : vector<1x8x32xf32> to vector<8x32xf32>
    %cst_66 = arith.constant dense<0.000000e+00> : vector<8x32xf32>
    %208 = tpu.matmul %193, %6, %cst_66 {dimension_numbers = #tpu.dot_dimension_numbers<[1], [0], [0], [1], [0, 0, 1, 1], [], []>} : vector<8x32xbf16>, vector<32x32xbf16>, vector<8x32xf32> -> vector<8x32xf32>
    %209 = arith.addf %207, %208 : vector<8x32xf32>
    %210 = arith.negf %209 : vector<8x32xf32>
    %211 = math.exp %210 : vector<8x32xf32>
    %cst_67 = arith.constant 1.000000e+00 : f32
    %212 = vector.broadcast %cst_67 : f32 to vector<8x32xf32>
    %213 = arith.addf %212, %211 : vector<8x32xf32>
    %214 = arith.divf %212, %213 : vector<8x32xf32>
    %215 = vector.extract_strided_slice %196 {offsets = [2, 0, 0], sizes = [1, 8, 32], strides = [1, 1, 1]} : vector<4x8x32xf32> to vector<1x8x32xf32>
    %216 = vector.shape_cast %215 : vector<1x8x32xf32> to vector<8x32xf32>
    %cst_68 = arith.constant dense<0.000000e+00> : vector<8x32xf32>
    %217 = tpu.matmul %193, %8, %cst_68 {dimension_numbers = #tpu.dot_dimension_numbers<[1], [0], [0], [1], [0, 0, 1, 1], [], []>} : vector<8x32xbf16>, vector<32x32xbf16>, vector<8x32xf32> -> vector<8x32xf32>
    %218 = arith.addf %216, %217 : vector<8x32xf32>
    %219 = math.tanh %218 : vector<8x32xf32>
    %220 = vector.extract_strided_slice %196 {offsets = [3, 0, 0], sizes = [1, 8, 32], strides = [1, 1, 1]} : vector<4x8x32xf32> to vector<1x8x32xf32>
    %221 = vector.shape_cast %220 : vector<1x8x32xf32> to vector<8x32xf32>
    %cst_69 = arith.constant dense<0.000000e+00> : vector<8x32xf32>
    %222 = tpu.matmul %193, %10, %cst_69 {dimension_numbers = #tpu.dot_dimension_numbers<[1], [0], [0], [1], [0, 0, 1, 1], [], []>} : vector<8x32xbf16>, vector<32x32xbf16>, vector<8x32xf32> -> vector<8x32xf32>
    %223 = arith.addf %221, %222 : vector<8x32xf32>
    %224 = arith.negf %223 : vector<8x32xf32>
    %225 = math.exp %224 : vector<8x32xf32>
    %cst_70 = arith.constant 1.000000e+00 : f32
    %226 = vector.broadcast %cst_70 : f32 to vector<8x32xf32>
    %227 = arith.addf %226, %225 : vector<8x32xf32>
    %228 = arith.divf %226, %227 : vector<8x32xf32>
    %229 = arith.mulf %214, %186 : vector<8x32xf32>
    %230 = arith.mulf %205, %219 : vector<8x32xf32>
    %231 = arith.addf %229, %230 : vector<8x32xf32>
    %232 = math.tanh %231 : vector<8x32xf32>
    %233 = arith.mulf %228, %232 : vector<8x32xf32>
    %234 = arith.index_cast %c4_i32 : i32 to index
    %c0_71 = arith.constant 0 : index
    %c0_72 = arith.constant 0 : index
    %235 = vector.load %arg4[%234, %c0_71, %c0_72] : memref<8x8x32xf32, #tpu.memory_space<vmem>>, vector<1x8x32xf32>
    %236 = vector.shape_cast %235 : vector<1x8x32xf32> to vector<8x32xf32>
    %237 = vector.shape_cast %233 : vector<8x32xf32> to vector<1x8x32xf32>
    tpu.vector_store %arg4[%234, %c0_71, %c0_72], %237 {strides = array<i32>} : memref<8x8x32xf32, #tpu.memory_space<vmem>>, vector<1x8x32xf32>,
    %c5_i32 = arith.constant 5 : i32
    %238 = arith.truncf %233 : vector<8x32xf32> to vector<8x32xbf16>
    %239 = arith.index_cast %c5_i32 : i32 to index
    %c0_73 = arith.constant 0 : index
    %c0_74 = arith.constant 0 : index
    %c0_75 = arith.constant 0 : index
    %240 = vector.load %arg2[%239, %c0_73, %c0_74, %c0_75] : memref<8x4x8x32xf32, #tpu.memory_space<vmem>>, vector<1x4x8x32xf32>
    %241 = vector.shape_cast %240 : vector<1x4x8x32xf32> to vector<4x8x32xf32>
    %242 = vector.extract_strided_slice %241 {offsets = [0, 0, 0], sizes = [1, 8, 32], strides = [1, 1, 1]} : vector<4x8x32xf32> to vector<1x8x32xf32>
    %243 = vector.shape_cast %242 : vector<1x8x32xf32> to vector<8x32xf32>
    %cst_76 = arith.constant dense<0.000000e+00> : vector<8x32xf32>
    %244 = tpu.matmul %238, %4, %cst_76 {dimension_numbers = #tpu.dot_dimension_numbers<[1], [0], [0], [1], [0, 0, 1, 1], [], []>} : vector<8x32xbf16>, vector<32x32xbf16>, vector<8x32xf32> -> vector<8x32xf32>
    %245 = arith.addf %243, %244 : vector<8x32xf32>
    %246 = arith.negf %245 : vector<8x32xf32>
    %247 = math.exp %246 : vector<8x32xf32>
    %cst_77 = arith.constant 1.000000e+00 : f32
    %248 = vector.broadcast %cst_77 : f32 to vector<8x32xf32>
    %249 = arith.addf %248, %247 : vector<8x32xf32>
    %250 = arith.divf %248, %249 : vector<8x32xf32>
    %251 = vector.extract_strided_slice %241 {offsets = [1, 0, 0], sizes = [1, 8, 32], strides = [1, 1, 1]} : vector<4x8x32xf32> to vector<1x8x32xf32>
    %252 = vector.shape_cast %251 : vector<1x8x32xf32> to vector<8x32xf32>
    %cst_78 = arith.constant dense<0.000000e+00> : vector<8x32xf32>
    %253 = tpu.matmul %238, %6, %cst_78 {dimension_numbers = #tpu.dot_dimension_numbers<[1], [0], [0], [1], [0, 0, 1, 1], [], []>} : vector<8x32xbf16>, vector<32x32xbf16>, vector<8x32xf32> -> vector<8x32xf32>
    %254 = arith.addf %252, %253 : vector<8x32xf32>
    %255 = arith.negf %254 : vector<8x32xf32>
    %256 = math.exp %255 : vector<8x32xf32>
    %cst_79 = arith.constant 1.000000e+00 : f32
    %257 = vector.broadcast %cst_79 : f32 to vector<8x32xf32>
    %258 = arith.addf %257, %256 : vector<8x32xf32>
    %259 = arith.divf %257, %258 : vector<8x32xf32>
    %260 = vector.extract_strided_slice %241 {offsets = [2, 0, 0], sizes = [1, 8, 32], strides = [1, 1, 1]} : vector<4x8x32xf32> to vector<1x8x32xf32>
    %261 = vector.shape_cast %260 : vector<1x8x32xf32> to vector<8x32xf32>
    %cst_80 = arith.constant dense<0.000000e+00> : vector<8x32xf32>
    %262 = tpu.matmul %238, %8, %cst_80 {dimension_numbers = #tpu.dot_dimension_numbers<[1], [0], [0], [1], [0, 0, 1, 1], [], []>} : vector<8x32xbf16>, vector<32x32xbf16>, vector<8x32xf32> -> vector<8x32xf32>
    %263 = arith.addf %261, %262 : vector<8x32xf32>
    %264 = math.tanh %263 : vector<8x32xf32>
    %265 = vector.extract_strided_slice %241 {offsets = [3, 0, 0], sizes = [1, 8, 32], strides = [1, 1, 1]} : vector<4x8x32xf32> to vector<1x8x32xf32>
    %266 = vector.shape_cast %265 : vector<1x8x32xf32> to vector<8x32xf32>
    %cst_81 = arith.constant dense<0.000000e+00> : vector<8x32xf32>
    %267 = tpu.matmul %238, %10, %cst_81 {dimension_numbers = #tpu.dot_dimension_numbers<[1], [0], [0], [1], [0, 0, 1, 1], [], []>} : vector<8x32xbf16>, vector<32x32xbf16>, vector<8x32xf32> -> vector<8x32xf32>
    %268 = arith.addf %266, %267 : vector<8x32xf32>
    %269 = arith.negf %268 : vector<8x32xf32>
    %270 = math.exp %269 : vector<8x32xf32>
    %cst_82 = arith.constant 1.000000e+00 : f32
    %271 = vector.broadcast %cst_82 : f32 to vector<8x32xf32>
    %272 = arith.addf %271, %270 : vector<8x32xf32>
    %273 = arith.divf %271, %272 : vector<8x32xf32>
    %274 = arith.mulf %259, %231 : vector<8x32xf32>
    %275 = arith.mulf %250, %264 : vector<8x32xf32>
    %276 = arith.addf %274, %275 : vector<8x32xf32>
    %277 = math.tanh %276 : vector<8x32xf32>
    %278 = arith.mulf %273, %277 : vector<8x32xf32>
    %279 = arith.index_cast %c5_i32 : i32 to index
    %c0_83 = arith.constant 0 : index
    %c0_84 = arith.constant 0 : index
    %280 = vector.load %arg4[%279, %c0_83, %c0_84] : memref<8x8x32xf32, #tpu.memory_space<vmem>>, vector<1x8x32xf32>
    %281 = vector.shape_cast %280 : vector<1x8x32xf32> to vector<8x32xf32>
    %282 = vector.shape_cast %278 : vector<8x32xf32> to vector<1x8x32xf32>
    tpu.vector_store %arg4[%279, %c0_83, %c0_84], %282 {strides = array<i32>} : memref<8x8x32xf32, #tpu.memory_space<vmem>>, vector<1x8x32xf32>,
    %c6_i32 = arith.constant 6 : i32
    %283 = arith.truncf %278 : vector<8x32xf32> to vector<8x32xbf16>
    %284 = arith.index_cast %c6_i32 : i32 to index
    %c0_85 = arith.constant 0 : index
    %c0_86 = arith.constant 0 : index
    %c0_87 = arith.constant 0 : index
    %285 = vector.load %arg2[%284, %c0_85, %c0_86, %c0_87] : memref<8x4x8x32xf32, #tpu.memory_space<vmem>>, vector<1x4x8x32xf32>
    %286 = vector.shape_cast %285 : vector<1x4x8x32xf32> to vector<4x8x32xf32>
    %287 = vector.extract_strided_slice %286 {offsets = [0, 0, 0], sizes = [1, 8, 32], strides = [1, 1, 1]} : vector<4x8x32xf32> to vector<1x8x32xf32>
    %288 = vector.shape_cast %287 : vector<1x8x32xf32> to vector<8x32xf32>
    %cst_88 = arith.constant dense<0.000000e+00> : vector<8x32xf32>
    %289 = tpu.matmul %283, %4, %cst_88 {dimension_numbers = #tpu.dot_dimension_numbers<[1], [0], [0], [1], [0, 0, 1, 1], [], []>} : vector<8x32xbf16>, vector<32x32xbf16>, vector<8x32xf32> -> vector<8x32xf32>
    %290 = arith.addf %288, %289 : vector<8x32xf32>
    %291 = arith.negf %290 : vector<8x32xf32>
    %292 = math.exp %291 : vector<8x32xf32>
    %cst_89 = arith.constant 1.000000e+00 : f32
    %293 = vector.broadcast %cst_89 : f32 to vector<8x32xf32>
    %294 = arith.addf %293, %292 : vector<8x32xf32>
    %295 = arith.divf %293, %294 : vector<8x32xf32>
    %296 = vector.extract_strided_slice %286 {offsets = [1, 0, 0], sizes = [1, 8, 32], strides = [1, 1, 1]} : vector<4x8x32xf32> to vector<1x8x32xf32>
    %297 = vector.shape_cast %296 : vector<1x8x32xf32> to vector<8x32xf32>
    %cst_90 = arith.constant dense<0.000000e+00> : vector<8x32xf32>
    %298 = tpu.matmul %283, %6, %cst_90 {dimension_numbers = #tpu.dot_dimension_numbers<[1], [0], [0], [1], [0, 0, 1, 1], [], []>} : vector<8x32xbf16>, vector<32x32xbf16>, vector<8x32xf32> -> vector<8x32xf32>
    %299 = arith.addf %297, %298 : vector<8x32xf32>
    %300 = arith.negf %299 : vector<8x32xf32>
    %301 = math.exp %300 : vector<8x32xf32>
    %cst_91 = arith.constant 1.000000e+00 : f32
    %302 = vector.broadcast %cst_91 : f32 to vector<8x32xf32>
    %303 = arith.addf %302, %301 : vector<8x32xf32>
    %304 = arith.divf %302, %303 : vector<8x32xf32>
    %305 = vector.extract_strided_slice %286 {offsets = [2, 0, 0], sizes = [1, 8, 32], strides = [1, 1, 1]} : vector<4x8x32xf32> to vector<1x8x32xf32>
    %306 = vector.shape_cast %305 : vector<1x8x32xf32> to vector<8x32xf32>
    %cst_92 = arith.constant dense<0.000000e+00> : vector<8x32xf32>
    %307 = tpu.matmul %283, %8, %cst_92 {dimension_numbers = #tpu.dot_dimension_numbers<[1], [0], [0], [1], [0, 0, 1, 1], [], []>} : vector<8x32xbf16>, vector<32x32xbf16>, vector<8x32xf32> -> vector<8x32xf32>
    %308 = arith.addf %306, %307 : vector<8x32xf32>
    %309 = math.tanh %308 : vector<8x32xf32>
    %310 = vector.extract_strided_slice %286 {offsets = [3, 0, 0], sizes = [1, 8, 32], strides = [1, 1, 1]} : vector<4x8x32xf32> to vector<1x8x32xf32>
    %311 = vector.shape_cast %310 : vector<1x8x32xf32> to vector<8x32xf32>
    %cst_93 = arith.constant dense<0.000000e+00> : vector<8x32xf32>
    %312 = tpu.matmul %283, %10, %cst_93 {dimension_numbers = #tpu.dot_dimension_numbers<[1], [0], [0], [1], [0, 0, 1, 1], [], []>} : vector<8x32xbf16>, vector<32x32xbf16>, vector<8x32xf32> -> vector<8x32xf32>
    %313 = arith.addf %311, %312 : vector<8x32xf32>
    %314 = arith.negf %313 : vector<8x32xf32>
    %315 = math.exp %314 : vector<8x32xf32>
    %cst_94 = arith.constant 1.000000e+00 : f32
    %316 = vector.broadcast %cst_94 : f32 to vector<8x32xf32>
    %317 = arith.addf %316, %315 : vector<8x32xf32>
    %318 = arith.divf %316, %317 : vector<8x32xf32>
    %319 = arith.mulf %304, %276 : vector<8x32xf32>
    %320 = arith.mulf %295, %309 : vector<8x32xf32>
    %321 = arith.addf %319, %320 : vector<8x32xf32>
    %322 = math.tanh %321 : vector<8x32xf32>
    %323 = arith.mulf %318, %322 : vector<8x32xf32>
    %324 = arith.index_cast %c6_i32 : i32 to index
    %c0_95 = arith.constant 0 : index
    %c0_96 = arith.constant 0 : index
    %325 = vector.load %arg4[%324, %c0_95, %c0_96] : memref<8x8x32xf32, #tpu.memory_space<vmem>>, vector<1x8x32xf32>
    %326 = vector.shape_cast %325 : vector<1x8x32xf32> to vector<8x32xf32>
    %327 = vector.shape_cast %323 : vector<8x32xf32> to vector<1x8x32xf32>
    tpu.vector_store %arg4[%324, %c0_95, %c0_96], %327 {strides = array<i32>} : memref<8x8x32xf32, #tpu.memory_space<vmem>>, vector<1x8x32xf32>,
    %c7_i32 = arith.constant 7 : i32
    %328 = arith.truncf %323 : vector<8x32xf32> to vector<8x32xbf16>
    %329 = arith.index_cast %c7_i32 : i32 to index
    %c0_97 = arith.constant 0 : index
    %c0_98 = arith.constant 0 : index
    %c0_99 = arith.constant 0 : index
    %330 = vector.load %arg2[%329, %c0_97, %c0_98, %c0_99] : memref<8x4x8x32xf32, #tpu.memory_space<vmem>>, vector<1x4x8x32xf32>
    %331 = vector.shape_cast %330 : vector<1x4x8x32xf32> to vector<4x8x32xf32>
    %332 = vector.extract_strided_slice %331 {offsets = [0, 0, 0], sizes = [1, 8, 32], strides = [1, 1, 1]} : vector<4x8x32xf32> to vector<1x8x32xf32>
    %333 = vector.shape_cast %332 : vector<1x8x32xf32> to vector<8x32xf32>
    %cst_100 = arith.constant dense<0.000000e+00> : vector<8x32xf32>
    %334 = tpu.matmul %328, %4, %cst_100 {dimension_numbers = #tpu.dot_dimension_numbers<[1], [0], [0], [1], [0, 0, 1, 1], [], []>} : vector<8x32xbf16>, vector<32x32xbf16>, vector<8x32xf32> -> vector<8x32xf32>
    %335 = arith.addf %333, %334 : vector<8x32xf32>
    %336 = arith.negf %335 : vector<8x32xf32>
    %337 = math.exp %336 : vector<8x32xf32>
    %cst_101 = arith.constant 1.000000e+00 : f32
    %338 = vector.broadcast %cst_101 : f32 to vector<8x32xf32>
    %339 = arith.addf %338, %337 : vector<8x32xf32>
    %340 = arith.divf %338, %339 : vector<8x32xf32>
    %341 = vector.extract_strided_slice %331 {offsets = [1, 0, 0], sizes = [1, 8, 32], strides = [1, 1, 1]} : vector<4x8x32xf32> to vector<1x8x32xf32>
    %342 = vector.shape_cast %341 : vector<1x8x32xf32> to vector<8x32xf32>
    %cst_102 = arith.constant dense<0.000000e+00> : vector<8x32xf32>
    %343 = tpu.matmul %328, %6, %cst_102 {dimension_numbers = #tpu.dot_dimension_numbers<[1], [0], [0], [1], [0, 0, 1, 1], [], []>} : vector<8x32xbf16>, vector<32x32xbf16>, vector<8x32xf32> -> vector<8x32xf32>
    %344 = arith.addf %342, %343 : vector<8x32xf32>
    %345 = arith.negf %344 : vector<8x32xf32>
    %346 = math.exp %345 : vector<8x32xf32>
    %cst_103 = arith.constant 1.000000e+00 : f32
    %347 = vector.broadcast %cst_103 : f32 to vector<8x32xf32>
    %348 = arith.addf %347, %346 : vector<8x32xf32>
    %349 = arith.divf %347, %348 : vector<8x32xf32>
    %350 = vector.extract_strided_slice %331 {offsets = [2, 0, 0], sizes = [1, 8, 32], strides = [1, 1, 1]} : vector<4x8x32xf32> to vector<1x8x32xf32>
    %351 = vector.shape_cast %350 : vector<1x8x32xf32> to vector<8x32xf32>
    %cst_104 = arith.constant dense<0.000000e+00> : vector<8x32xf32>
    %352 = tpu.matmul %328, %8, %cst_104 {dimension_numbers = #tpu.dot_dimension_numbers<[1], [0], [0], [1], [0, 0, 1, 1], [], []>} : vector<8x32xbf16>, vector<32x32xbf16>, vector<8x32xf32> -> vector<8x32xf32>
    %353 = arith.addf %351, %352 : vector<8x32xf32>
    %354 = math.tanh %353 : vector<8x32xf32>
    %355 = vector.extract_strided_slice %331 {offsets = [3, 0, 0], sizes = [1, 8, 32], strides = [1, 1, 1]} : vector<4x8x32xf32> to vector<1x8x32xf32>
    %356 = vector.shape_cast %355 : vector<1x8x32xf32> to vector<8x32xf32>
    %cst_105 = arith.constant dense<0.000000e+00> : vector<8x32xf32>
    %357 = tpu.matmul %328, %10, %cst_105 {dimension_numbers = #tpu.dot_dimension_numbers<[1], [0], [0], [1], [0, 0, 1, 1], [], []>} : vector<8x32xbf16>, vector<32x32xbf16>, vector<8x32xf32> -> vector<8x32xf32>
    %358 = arith.addf %356, %357 : vector<8x32xf32>
    %359 = arith.negf %358 : vector<8x32xf32>
    %360 = math.exp %359 : vector<8x32xf32>
    %cst_106 = arith.constant 1.000000e+00 : f32
    %361 = vector.broadcast %cst_106 : f32 to vector<8x32xf32>
    %362 = arith.addf %361, %360 : vector<8x32xf32>
    %363 = arith.divf %361, %362 : vector<8x32xf32>
    %364 = arith.mulf %349, %321 : vector<8x32xf32>
    %365 = arith.mulf %340, %354 : vector<8x32xf32>
    %366 = arith.addf %364, %365 : vector<8x32xf32>
    %367 = math.tanh %366 : vector<8x32xf32>
    %368 = arith.mulf %363, %367 : vector<8x32xf32>
    %369 = arith.index_cast %c7_i32 : i32 to index
    %c0_107 = arith.constant 0 : index
    %c0_108 = arith.constant 0 : index
    %370 = vector.load %arg4[%369, %c0_107, %c0_108] : memref<8x8x32xf32, #tpu.memory_space<vmem>>, vector<1x8x32xf32>
    %371 = vector.shape_cast %370 : vector<1x8x32xf32> to vector<8x32xf32>
    %372 = vector.shape_cast %368 : vector<8x32xf32> to vector<1x8x32xf32>
    tpu.vector_store %arg4[%369, %c0_107, %c0_108], %372 {strides = array<i32>} : memref<8x8x32xf32, #tpu.memory_space<vmem>>, vector<1x8x32xf32>,
    %c8_i32 = arith.constant 8 : i32
    %c0_109 = arith.constant 0 : index
    %c0_110 = arith.constant 0 : index
    %373 = vector.load %arg5[%c0_109, %c0_110] : memref<8x32xf32, #tpu.memory_space<vmem>>, vector<8x32xf32>
    tpu.vector_store %arg5[%c0_109, %c0_110], %368 {strides = array<i32>} : memref<8x32xf32, #tpu.memory_space<vmem>>, vector<8x32xf32>,
    %c0_111 = arith.constant 0 : index
    %c0_112 = arith.constant 0 : index
    %374 = vector.load %arg6[%c0_111, %c0_112] : memref<8x32xf32, #tpu.memory_space<vmem>>, vector<8x32xf32>
    tpu.vector_store %arg6[%c0_111, %c0_112], %366 {strides = array<i32>} : memref<8x32xf32, #tpu.memory_space<vmem>>, vector<8x32xf32>,
    return
  }
  func.func @transform_0(%arg0: i32, %arg1: i32) -> (i32, i32, i32, i32) {
    %c0_i32 = arith.constant 0 : i32
    %c0_i32_0 = arith.constant 0 : i32
    %c0_i32_1 = arith.constant 0 : i32
    return %arg1, %c0_i32, %arg0, %c0_i32_0 : i32, i32, i32, i32
  }
  func.func @transform_1(%arg0: i32, %arg1: i32) -> (i32, i32, i32) {
    %c0_i32 = arith.constant 0 : i32
    %c0_i32_0 = arith.constant 0 : i32
    %c0_i32_1 = arith.constant 0 : i32
    %c0_i32_2 = arith.constant 0 : i32
    return %c0_i32, %c0_i32_0, %c0_i32_1 : i32, i32, i32
  }
  func.func @transform_2(%arg0: i32, %arg1: i32) -> (i32, i32, i32) {
    %c0_i32 = arith.constant 0 : i32
    %c0_i32_0 = arith.constant 0 : i32
    return %arg1, %arg0, %c0_i32 : i32, i32, i32
  }
}

</mosaic_0001>

<llo_original>
// kernel: decoder_rnn_forward.5
$region0: #{decoder_rnn_forward.5}
  #allocation0 [shape = 'u32[]', space=smem, size = 0x4, offset = 0x4, fixed_abs, tag = 'smem constant byte address 0x4 - core index']
  #allocation1 [shape = 'u32[72,128]{1,0:T(1,128)}', space=vmem, size = 0x9000, scoped, tag = 'internal scratch']
  %s0 = inlined_call_operand.vmem [shape: bf16[16,32], index: 0, kind: input, shape index: {}]
  %s1 = inlined_call_operand.vmem [shape: bf16[32,128], index: 1, kind: input, shape index: {}]
  %s2 = inlined_call_operand.vmem [shape: f32[1,128], index: 2, kind: input, shape index: {}]
  %s3 = inlined_call_operand.hbm [shape: f32[16,128], index: 3, kind: output, shape index: {}]
  %s4 = sld [smem:[#allocation0]]
  $region22: #{decoder_rnn_forward.5} parent=0
    _
  %s6 = ssub.s32 1, %s4
  %s7 = scalar_select 0, %s6, %s4
  $region1: #{decoder_rnn_forward.5} parent=0
    #allocation2 [shape = 'u8[8192]{0}', space=vmem, size = 0x2000, scoped, tag = 'output window, operand 0, single buffered']
    #allocation3 [shape = 's32[1]{0}', space=sflag, size = 0x4, scoped, tag = 'scoped memory for decoder_rnn_forward.5']
    %8 = vsyncpa [#allocation3], 0
    // Predicated region
    $region2: #{decoder_rnn_forward.5} parent=1 // pred_check
      _
    $region3: #{decoder_rnn_forward.5} parent=1 // pred_check_branch
      %10 = sbr.rel (0) target = $region5
    $region4: #{decoder_rnn_forward.5} parent=1 // pred_region
      _
    $region5: #{decoder_rnn_forward.5} parent=1 // pred_fallthru
      _
    // Predicated region
    $region6: #{decoder_rnn_forward.5} parent=1 // pred_check
      _
    $region7: #{decoder_rnn_forward.5} parent=1 // pred_check_branch
      %12 = sbr.rel (0) target = $region9
    $region8: #{decoder_rnn_forward.5} parent=1 // pred_region
      _
    $region9: #{decoder_rnn_forward.5} parent=1 // pred_fallthru
      _
    // Predicated region
    $region10: #{decoder_rnn_forward.5} parent=1 // pred_check
      _
    $region11: #{decoder_rnn_forward.5} parent=1 // pred_check_branch
      %14 = sbr.rel (0) target = $region13
    $region12: #{decoder_rnn_forward.5} parent=1 // pred_region
      _
    $region13: #{decoder_rnn_forward.5} parent=1 // pred_fallthru
      _
    %v16 = vld [vmem:[%s0] sm:$0xf]
    %v17 = vld [vmem:[%s0 + $0x4] sm:$0xf]
    %v18 = vld [vmem:[%s1] sm:$0xf]
    %v19 = vld [vmem:[%s1 + $0x4] sm:$0xf]
    %v20 = vld [vmem:[%s1 + $0x8] sm:$0xf]
    %v21 = vld [vmem:[%s1 + $0xc] sm:$0xf]
    %v22 = vld [vmem:[%s2] sm:$0x1]
    %v24 = vperm.slane %v22, 0
    %v28 = vunpack.c.l.b16 %v16
    %v29 = vunpack.c.l.b16 %v17
    %v30 = vpack.c.b16 %v29, %v28
    %v35 = vunpack.c.l.b16 %v18
    %v36 = vunpack.c.l.b16 %v19
    %v37 = vunpack.c.l.b16 %v20
    %v38 = vunpack.c.l.b16 %v21
    %v39 = vpack.c.b16 %v36, %v35
    %v40 = vpack.c.b16 %v38, %v37
    %vm43 = vcmask 261120
    %v45 = vsel %vm43, %v30, 0
    %47 = vmatpush.bf16.msra.mxu0 0
    %48 = vmatpush.bf16.msra.mxu0 0
    %49 = vmatpush.bf16.msra.mxu0 0
    %50 = vmatpush.bf16.msra.mxu0 0
    %51 = vmatpush.bf16.msra.mxu0 0
    %52 = vmatpush.bf16.msra.mxu0 0
    %53 = vmatpush.bf16.msra.mxu0 %v40
    %54 = vmatpush.bf16.msra.mxu0 %v39
    %55 = vmatmul.bf16.gmra.mxu0 %v45
    %v56 = vpop.f32.mrf.mxu0
    %v57 = vadd.f32 %v24, %v56
    %v58 = vpop.f32.mrf.mxu0
    %v59 = vadd.f32 %v24, %v58
    %60 = vdwg.mxu0
    %61 = vst [vmem:[#allocation2] sm:$0xff] %v57
    %62 = vst [vmem:[#allocation2 + $0x8] sm:$0xff] %v59
    // Predicated region
    $region14: #{decoder_rnn_forward.5} parent=1 // pred_check
      _
    $region15: #{decoder_rnn_forward.5} parent=1 // pred_check_branch
      %64 = sbr.rel (0) target = $region17
    $region16: #{decoder_rnn_forward.5} parent=1 // pred_region
      %66 = vsyncadd [#allocation3], 0
      %s67 = sshll.u32 [#allocation2], 4
      %s68 = int_to_ptr.vmem [resolvable:$true] %s67
      %s69 = sshll.u32 %s3, 4
      %s70 = int_to_ptr.hbm [resolvable:$true] %s69
      %75 = dma.vmem_to_hbm [thread:$0]  %s68, 256, %s70, [#allocation3], 128, 128, 8
    $region17: #{decoder_rnn_forward.5} parent=1 // pred_fallthru
      _
    // Predicated region
    $region18: #{decoder_rnn_forward.5} parent=1 // pred_check
      _
    $region19: #{decoder_rnn_forward.5} parent=1 // pred_check_branch
      %77 = sbr.rel (0) target = $region21
    $region20: #{decoder_rnn_forward.5} parent=1 // pred_region
      %79 = dma.done [#allocation3], 256
    $region21: #{decoder_rnn_forward.5} parent=1 // pred_fallthru
      _
    %80 = vsyncpa [#allocation3], 1

// kernel: decoder_rnn_forward.3
$region0: #{decoder_rnn_forward.3}
  #allocation0 [shape = 'u32[]', space=smem, size = 0x4, offset = 0x4, fixed_abs, tag = 'smem constant byte address 0x4 - core index']
  #allocation1 [shape = 'u32[72,128]{1,0:T(1,128)}', space=vmem, size = 0x9000, scoped, tag = 'internal scratch']
  %s0 = inlined_call_operand.vmem [shape: bf16[64,32], index: 0, kind: input, shape index: {}]
  %s1 = inlined_call_operand.vmem [shape: bf16[4,32,32], index: 1, kind: input, shape index: {}]
  %s2 = inlined_call_operand.vmem [shape: f32[4,1,32], index: 2, kind: input, shape index: {}]
  %s3 = inlined_call_operand.vmem [shape: f32[8,4,8,32], index: 3, kind: output, shape index: {}]
  %s4 = sld [smem:[#allocation0]]
  $region79: #{decoder_rnn_forward.3} parent=0
    _
  %s6 = ssub.s32 1, %s4
  %s7 = scalar_select 0, %s6, %s4
  $region1: #{decoder_rnn_forward.3} parent=0
    #allocation2 [shape = 'u8[65536]{0}', space=vmem, size = 0x10000, scoped, tag = 'output window, operand 0']
    loop: start=0, step=1, limit=6
    $region2: #{decoder_rnn_forward.3} parent=1 // loop_pre_header
      _
    $region3: #{decoder_rnn_forward.3} parent=1 // loop_header
      %s9 = sphi 0, %s13
      %p10 = scmp.ge.s32.totalorder %s9, 6
      %s16 = sphi 0, %s28
      %s17 = sphi 0, %s24
      %s18 = sphi 0, %s16
      %s19 = sphi 0, %s17
      %s20 = sphi 0, %s18
      %s21 = sphi 0, %s19
      %s31 = sphi 0, %s33
      %s34 = sphi 0, %s31
      %s35 = sphi 0, %s34
      %s51 = sphi 0, %s35
      %s57 = sphi 0, %s59
      %s60 = sphi 0, %s57
      %s61 = sphi 0, %s60
      %s77 = sphi 0, %s61
      %s83 = sphi 0, %s85
      %s86 = sphi 0, %s83
      %s87 = sphi 0, %s86
      %s103 = sphi 0, %s87
      %s111 = sphi 0, %s113
      %s114 = sphi 0, %s111
      %s115 = sphi 0, %s114
      %s131 = sphi 0, %s115
    $region4: #{decoder_rnn_forward.3} parent=1 // loop_header_branch
      %12 = sbr.rel (%p10) target = $region8
    $region5: #{decoder_rnn_forward.3} parent=1 // loop_body
      %s14 = ssub.s32 %s9, 1
      %s15 = ssub.s32 %s9, 2
      %s22 = sadd.s32 1, %s17
      %p23 = scmp.ge.s32.totalorder %s22, 4
      %s24 = scalar_select %p23, 0, %s22
      %s25 = sadd.s32 1, %s16
      %s26 = scalar_select %p23, %s25, %s16
      %p27 = scmp.ge.s32.totalorder %s26, 1
      %s28 = scalar_select %p27, 0, %s26
      %s29 = ssub.s32 %s16, %s28
      %p30 = scmp.eq.s32.totalorder %s29, 0
      %s32 = sadd.s32 %s31, 1
      %s33 = scalar_select %p30, %s31, %s32
      %p36 = pneg %p30
      %p37 = scmp.eq.s32.totalorder %s9, 3
      %p38 = por %p36, %p37
      %p39 = scmp.ne.s32.totalorder %s31, %s34
      %p40 = scmp.eq.s32.totalorder %s9, 0
      %p41 = por %p39, %p40
      %p42 = scmp.ne.s32.totalorder %s31, %s34
      %p43 = scmp.eq.s32.totalorder %s14, 3
      %p44 = por %p42, %p43
      %p45 = scmp.ne.s32.totalorder %s34, %s35
      %p46 = scmp.eq.s32.totalorder %s14, 0
      %p47 = por %p45, %p46
      %p48 = scmp.ne.s32.totalorder %s34, %s35
      %p49 = scmp.eq.s32.totalorder %s15, 3
      %p50 = por %p48, %p49
      %p52 = scmp.ne.s32.totalorder %s35, %s51
      %p53 = scmp.eq.s32.totalorder %s15, 0
      %p54 = por %p52, %p53
      %s55 = ssub.s32 %s17, %s24
      %p56 = scmp.eq.s32.totalorder %s55, 0
      %s58 = sadd.s32 %s57, 1
      %s59 = scalar_select %p56, %s57, %s58
      %p62 = pneg %p56
      %p63 = scmp.eq.s32.totalorder %s9, 3
      %p64 = por %p62, %p63
      %p65 = scmp.ne.s32.totalorder %s57, %s60
      %p66 = scmp.eq.s32.totalorder %s9, 0
      %p67 = por %p65, %p66
      %p68 = scmp.ne.s32.totalorder %s57, %s60
      %p69 = scmp.eq.s32.totalorder %s14, 3
      %p70 = por %p68, %p69
      %p71 = scmp.ne.s32.totalorder %s60, %s61
      %p72 = scmp.eq.s32.totalorder %s14, 0
      %p73 = por %p71, %p72
      %p74 = scmp.ne.s32.totalorder %s60, %s61
      %p75 = scmp.eq.s32.totalorder %s15, 3
      %p76 = por %p74, %p75
      %p78 = scmp.ne.s32.totalorder %s61, %s77
      %p79 = scmp.eq.s32.totalorder %s15, 0
      %p80 = por %p78, %p79
      %s81 = ssub.s32 %s17, %s24
      %p82 = scmp.eq.s32.totalorder %s81, 0
      %s84 = sadd.s32 %s83, 1
      %s85 = scalar_select %p82, %s83, %s84
      %p88 = pneg %p82
      %p89 = scmp.eq.s32.totalorder %s9, 3
      %p90 = por %p88, %p89
      %p91 = scmp.ne.s32.totalorder %s83, %s86
      %p92 = scmp.eq.s32.totalorder %s9, 0
      %p93 = por %p91, %p92
      %p94 = scmp.ne.s32.totalorder %s83, %s86
      %p95 = scmp.eq.s32.totalorder %s14, 3
      %p96 = por %p94, %p95
      %p97 = scmp.ne.s32.totalorder %s86, %s87
      %p98 = scmp.eq.s32.totalorder %s14, 0
      %p99 = por %p97, %p98
      %p100 = scmp.ne.s32.totalorder %s86, %s87
      %p101 = scmp.eq.s32.totalorder %s15, 3
      %p102 = por %p100, %p101
      %p104 = scmp.ne.s32.totalorder %s87, %s103
      %p105 = scmp.eq.s32.totalorder %s15, 0
      %p106 = por %p104, %p105
      %s107 = ssub.s32 %s16, %s28
      %s108 = ssub.s32 %s17, %s24
      %s109 = sor.u32 %s107, %s108
      %p110 = scmp.eq.s32.totalorder %s109, 0
      %s112 = sadd.s32 %s111, 1
      %s113 = scalar_select %p110, %s111, %s112
      %p116 = pneg %p110
      %p117 = scmp.eq.s32.totalorder %s9, 3
      %p118 = por %p116, %p117
      %p119 = scmp.ne.s32.totalorder %s111, %s114
      %p120 = scmp.eq.s32.totalorder %s9, 0
      %p121 = por %p119, %p120
      %p122 = scmp.ne.s32.totalorder %s111, %s114
      %p123 = scmp.eq.s32.totalorder %s14, 3
      %p124 = por %p122, %p123
      %p125 = scmp.ne.s32.totalorder %s114, %s115
      %p126 = scmp.eq.s32.totalorder %s14, 0
      %p127 = por %p125, %p126
      %p128 = scmp.ne.s32.totalorder %s114, %s115
      %p129 = scmp.eq.s32.totalorder %s15, 3
      %p130 = por %p128, %p129
      %p132 = scmp.ne.s32.totalorder %s115, %s131
      %p133 = scmp.eq.s32.totalorder %s15, 0
      %p134 = por %p132, %p133
      %p135 = scmp.le.s32.totalorder 1, %s9
      %p136 = scmp.lt.s32.totalorder %s9, 5
      %p137 = pnand %p135, %p136
      %p138 = pneg %p137
      // Predicated region
      $region9: #{decoder_rnn_forward.3} parent=5 // pred_check
        _
      $region10: #{decoder_rnn_forward.3} parent=5 // pred_check_branch
        %140 = sbr.rel (%p137) target = $region12
      $region11: #{decoder_rnn_forward.3} parent=5 // pred_region
        %s141 = ssub.s32 %s9, 1
        // Predicated region
        $region13: #{decoder_rnn_forward.3} parent=11 // pred_check
          %p142 = pneg %p47
        $region14: #{decoder_rnn_forward.3} parent=11 // pred_check_branch
          %144 = sbr.rel (%p142) target = $region16
        $region15: #{decoder_rnn_forward.3} parent=11 // pred_region
          %s145 = smul.u32 8, %s18
          %p146 = scmp.lt.s32.totalorder %s145, 7
          %s147 = scalar_select %p146, %s145, 7
          %s148 = smul.addr %s147, 4
          %s149 = scalar_lea.vmem %s0, %s148
          %s150 = smul.u32 8, %s18
        $region16: #{decoder_rnn_forward.3} parent=11 // pred_fallthru
          _
      $region12: #{decoder_rnn_forward.3} parent=5 // pred_fallthru
        _
      %p151 = scmp.lt.s32.totalorder %s9, 4
      // Predicated region
      $region17: #{decoder_rnn_forward.3} parent=5 // pred_check
        %p152 = pneg %p151
      $region18: #{decoder_rnn_forward.3} parent=5 // pred_check_branch
        %154 = sbr.rel (%p152) target = $region20
      $region19: #{decoder_rnn_forward.3} parent=5 // pred_region
        // Predicated region
        $region21: #{decoder_rnn_forward.3} parent=19 // pred_check
          %p155 = pneg %p67
        $region22: #{decoder_rnn_forward.3} parent=19 // pred_check_branch
          %157 = sbr.rel (%p155) target = $region24
        $region23: #{decoder_rnn_forward.3} parent=19 // pred_region
          %p158 = scmp.lt.s32.totalorder %s17, 3
          %s159 = scalar_select %p158, %s17, 3
          %s160 = smul.addr %s159, 4
          %s161 = smul.addr %s160, 4
          %s162 = scalar_lea.vmem %s1, %s161
        $region24: #{decoder_rnn_forward.3} parent=19 // pred_fallthru
          _
        // Predicated region
        $region25: #{decoder_rnn_forward.3} parent=19 // pred_check
          %p163 = pneg %p93
        $region26: #{decoder_rnn_forward.3} parent=19 // pred_check_branch
          %165 = sbr.rel (%p163) target = $region28
        $region27: #{decoder_rnn_forward.3} parent=19 // pred_region
          %p166 = scmp.lt.s32.totalorder %s17, 3
          %s167 = scalar_select %p166, %s17, 3
          %s168 = scalar_lea.vmem %s2, %s167
        $region28: #{decoder_rnn_forward.3} parent=19 // pred_fallthru
          _
      $region20: #{decoder_rnn_forward.3} parent=5 // pred_fallthru
        _
      %p169 = scmp.le.s32.totalorder 1, %s9
      %p170 = scmp.lt.s32.totalorder %s9, 5
      %p171 = pnand %p169, %p170
      %p172 = pneg %p171
      // Predicated region
      $region29: #{decoder_rnn_forward.3} parent=5 // pred_check
        _
      $region30: #{decoder_rnn_forward.3} parent=5 // pred_check_branch
        %174 = sbr.rel (%p171) target = $region32
      $region31: #{decoder_rnn_forward.3} parent=5 // pred_region
        %s175 = ssub.s32 %s9, 1
        %s176 = smul.u32 8, %s18
        %p177 = scmp.lt.s32.totalorder %s176, 7
        %s178 = scalar_select %p177, %s176, 7
        %s179 = smul.addr %s178, 4
        %s180 = scalar_lea.vmem %s0, %s179
        %p181 = pneg %p47
        %p182 = pneg %p44
        %p183 = scmp.lt.s32.totalorder %s19, 3
        %s184 = scalar_select %p183, %s19, 3
        %s185 = smul.addr %s184, 4
        %s186 = smul.addr %s185, 4
        %s187 = scalar_lea.vmem %s1, %s186
        %p188 = pneg %p73
        %p189 = pneg %p70
        %p190 = scmp.lt.s32.totalorder %s19, 3
        %s191 = scalar_select %p190, %s19, 3
        %s192 = scalar_lea.vmem %s2, %s191
        %p193 = pneg %p99
        %p194 = pneg %p96
        %p195 = pneg %p127
        %p196 = pneg %p124
        %s197 = sand.u32 %s114, 1
        %s198 = sand.u32 %s114, 1
        %s199 = smul.addr %s198, 64
        %s200 = scalar_lea.vmem [#allocation2], %s199
        %s201 = smul.u32 8, %s18
        %p202 = scmp.lt.s32.totalorder %s201, 7
        %s203 = scalar_select %p202, %s201, 7
        %s204 = smul.addr %s203, 4
        %s205 = scalar_lea.vmem %s0, %s204
        %s206 = smul.u32 8, %s18
        %p207 = scmp.lt.s32.totalorder %s19, 3
        %s208 = scalar_select %p207, %s19, 3
        %s209 = smul.addr %s208, 4
        %s210 = smul.addr %s209, 4
        %s211 = scalar_lea.vmem %s1, %s210
        %p212 = scmp.lt.s32.totalorder %s19, 3
        %s213 = scalar_select %p212, %s19, 3
        %s214 = scalar_lea.vmem %s2, %s213
        %s215 = smul.u32 8, %s18
        %v217 = vld [vmem:[%s205] sm:$0xf]
        %v218 = vld [vmem:[%s205 + $0x4] sm:$0xf]
        %v219 = vld [vmem:[%s205 + $0x8] sm:$0xf]
        %v220 = vld [vmem:[%s205 + $0xc] sm:$0xf]
        %v221 = vld [vmem:[%s205 + $0x10] sm:$0xf]
        %v222 = vld [vmem:[%s205 + $0x14] sm:$0xf]
        %v223 = vld [vmem:[%s205 + $0x18] sm:$0xf]
        %v224 = vld [vmem:[%s205 + $0x1c] sm:$0xf]
        %v225 = vld [vmem:[%s211] sm:$0xf]
        %v226 = vld [vmem:[%s211 + $0x4] sm:$0xf]
        %v227 = vld [vmem:[%s211 + $0x8] sm:$0xf]
        %v228 = vld [vmem:[%s211 + $0xc] sm:$0xf]
        %v229 = vld [vmem:[%s214] sm:$0x1]
        %v231 = vperm.slane %v229, 0
        %v241 = vunpack.c.l.b16 %v217
        %v242 = vunpack.c.l.b16 %v218
        %v243 = vunpack.c.l.b16 %v219
        %v244 = vunpack.c.l.b16 %v220
        %v245 = vunpack.c.l.b16 %v221
        %v246 = vunpack.c.l.b16 %v222
        %v247 = vunpack.c.l.b16 %v223
        %v248 = vunpack.c.l.b16 %v224
        %v249 = vpack.c.b16 %v242, %v241
        %v250 = vpack.c.b16 %v244, %v243
        %v251 = vpack.c.b16 %v246, %v245
        %v252 = vpack.c.b16 %v248, %v247
        %v257 = vunpack.c.l.b16 %v225
        %v258 = vunpack.c.l.b16 %v226
        %v259 = vunpack.c.l.b16 %v227
        %v260 = vunpack.c.l.b16 %v228
        %v261 = vpack.c.b16 %v258, %v257
        %v262 = vpack.c.b16 %v260, %v259
        %vm265 = vcmask 261120
        %v267 = vsel %vm265, %v249, 0
        %v270 = vsel %vm265, %v250, 0
        %v273 = vsel %vm265, %v251, 0
        %v276 = vsel %vm265, %v252, 0
        %278 = vmatpush.bf16.msra.mxu0 0
        %279 = vmatpush.bf16.msra.mxu0 0
        %280 = vmatpush.bf16.msra.mxu0 0
        %281 = vmatpush.bf16.msra.mxu0 0
        %282 = vmatpush.bf16.msra.mxu0 0
        %283 = vmatpush.bf16.msra.mxu0 0
        %284 = vmatpush.bf16.msra.mxu0 %v262
        %285 = vmatpush.bf16.msra.mxu0 %v261
        %286 = vmatmul.bf16.gmra.mxu0 %v267
        %v287 = vpop.f32.mrf.mxu0
        %v288 = vadd.f32 %v231, %v287
        %v289 = vpop.f32.mrf.mxu0
        %v290 = vadd.f32 %v231, %v289
        %291 = vmatmul.bf16.gmra.mxu0 %v270
        %v292 = vpop.f32.mrf.mxu0
        %v293 = vadd.f32 %v231, %v292
        %v294 = vpop.f32.mrf.mxu0
        %v295 = vadd.f32 %v231, %v294
        %296 = vmatmul.bf16.gmra.mxu0 %v273
        %v297 = vpop.f32.mrf.mxu0
        %v298 = vadd.f32 %v231, %v297
        %v299 = vpop.f32.mrf.mxu0
        %v300 = vadd.f32 %v231, %v299
        %301 = vmatmul.bf16.gmra.mxu0 %v276
        %v302 = vpop.f32.mrf.mxu0
        %v303 = vadd.f32 %v231, %v302
        %v304 = vpop.f32.mrf.mxu0
        %v305 = vadd.f32 %v231, %v304
        %306 = vdwg.mxu0
        %307 = vst.msk [vmem:[%s200] sm:$0xff] %vm265, %v288
        %308 = vst.msk [vmem:[%s200 + $0x8] sm:$0xff] %vm265, %v290
        %309 = vst.msk [vmem:[%s200 + $0x10] sm:$0xff] %vm265, %v293
        %310 = vst.msk [vmem:[%s200 + $0x18] sm:$0xff] %vm265, %v295
        %311 = vst.msk [vmem:[%s200 + $0x20] sm:$0xff] %vm265, %v298
        %312 = vst.msk [vmem:[%s200 + $0x28] sm:$0xff] %vm265, %v300
        %313 = vst.msk [vmem:[%s200 + $0x30] sm:$0xff] %vm265, %v303
        %314 = vst.msk [vmem:[%s200 + $0x38] sm:$0xff] %vm265, %v305
        %s315 = sand.u32 %s114, 1
        %s316 = sand.u32 %s114, 1
        %s317 = smul.addr %s316, 64
        %s318 = scalar_lea.vmem [#allocation2], %s317
        // Predicated region
        $region33: #{decoder_rnn_forward.3} parent=31 // pred_check
          %p319 = pneg %p124
        $region34: #{decoder_rnn_forward.3} parent=31 // pred_check_branch
          %321 = sbr.rel (%p319) target = $region36
        $region35: #{decoder_rnn_forward.3} parent=31 // pred_region
          %s322 = smul.u32 8, %s18
          %s323 = smul.addr %s322, 4
          %s324 = sadd.s32 %s19, %s323
          %s325 = smul.addr %s324, 8
          %s326 = scalar_lea.vmem %s3, %s325
          // Predicated region
          $region37: #{decoder_rnn_forward.3} parent=35 // pred_check
            _
          $region38: #{decoder_rnn_forward.3} parent=35 // pred_check_branch
            %328 = sbr.rel (0) target = $region40
          $region39: #{decoder_rnn_forward.3} parent=35 // pred_region
            // Predicated region
            $region41: #{decoder_rnn_forward.3} parent=39 // pred_check
              _
            $region42: #{decoder_rnn_forward.3} parent=39 // pred_check_branch
              %330 = sbr.rel (0) target = $region44
            $region43: #{decoder_rnn_forward.3} parent=39 // pred_region
              // Predicated region
              $region56: #{decoder_rnn_forward.3} parent=43 // pred_check
                _
              $region57: #{decoder_rnn_forward.3} parent=43 // pred_check_branch
                %360 = sbr.rel (0) target = $region59
              $region58: #{decoder_rnn_forward.3} parent=43 // pred_region
                loop: start=0, step=1, limit=1
                $region60: #{decoder_rnn_forward.3} parent=58 // loop_pre_header
                  _
                $region61: #{decoder_rnn_forward.3} parent=58 // loop_header
                  %s362 = sphi 0, %s366
                  %p363 = scmp.ge.s32.totalorder %s362, 1
                  %s367 = sphi %s318, %s318
                  %s368 = sphi %s326, %s326
                $region62: #{decoder_rnn_forward.3} parent=58 // loop_header_branch
                  %365 = sbr.rel (%p363) target = $region66
                $region63: #{decoder_rnn_forward.3} parent=58 // loop_body
                  %v369 = vld [vmem:[%s367] sm:$0xff]
                  %370 = vst [vmem:[%s368] sm:$0xff] %v369
                  %v371 = vld [vmem:[%s367 + $0x8] sm:$0xff]
                  %372 = vst [vmem:[%s368 + $0x20] sm:$0xff] %v371
                  %v373 = vld [vmem:[%s367 + $0x10] sm:$0xff]
                  %374 = vst [vmem:[%s368 + $0x40] sm:$0xff] %v373
                  %v375 = vld [vmem:[%s367 + $0x18] sm:$0xff]
                  %376 = vst [vmem:[%s368 + $0x60] sm:$0xff] %v375
                  %v377 = vld [vmem:[%s367 + $0x20] sm:$0xff]
                  %378 = vst [vmem:[%s368 + $0x80] sm:$0xff] %v377
                  %v379 = vld [vmem:[%s367 + $0x28] sm:$0xff]
                  %380 = vst [vmem:[%s368 + $0xa0] sm:$0xff] %v379
                  %v381 = vld [vmem:[%s367 + $0x30] sm:$0xff]
                  %382 = vst [vmem:[%s368 + $0xc0] sm:$0xff] %v381
                  %v383 = vld [vmem:[%s367 + $0x38] sm:$0xff]
                  %384 = vst [vmem:[%s368 + $0xe0] sm:$0xff] %v383
                $region64: #{decoder_rnn_forward.3} parent=58 // loop_footer
                  %s366 = sadd.s32 1, %s362
                $region65: #{decoder_rnn_forward.3} parent=58 // loop_footer_branch
                  %361 = sbr.rel target = $region61
                $region66: #{decoder_rnn_forward.3} parent=58 // loop_exit
                  _
              $region59: #{decoder_rnn_forward.3} parent=43 // pred_fallthru
                _
              // Predicated region
              $region67: #{decoder_rnn_forward.3} parent=43 // pred_check
                _
              $region68: #{decoder_rnn_forward.3} parent=43 // pred_check_branch
                %386 = sbr.rel target = $region70
              $region69: #{decoder_rnn_forward.3} parent=43 // pred_region
                _
              $region70: #{decoder_rnn_forward.3} parent=43 // pred_fallthru
                _
            $region44: #{decoder_rnn_forward.3} parent=39 // pred_fallthru
              _
            // Predicated region
            $region45: #{decoder_rnn_forward.3} parent=39 // pred_check
              _
            $region46: #{decoder_rnn_forward.3} parent=39 // pred_check_branch
              %332 = sbr.rel target = $region48
            $region47: #{decoder_rnn_forward.3} parent=39 // pred_region
              %s334 = ssub.s32 256, 1
              loop: start=0, step=1, limit=1
              $region49: #{decoder_rnn_forward.3} parent=47 // loop_pre_header
                _
              $region50: #{decoder_rnn_forward.3} parent=47 // loop_header
                %s336 = sphi 0, %s340
                %p337 = scmp.ge.s32.totalorder %s336, 1
                %s341 = sphi %s318, %s318
                %s342 = sphi %s326, %s326
              $region51: #{decoder_rnn_forward.3} parent=47 // loop_header_branch
                %339 = sbr.rel (%p337) target = $region55
              $region52: #{decoder_rnn_forward.3} parent=47 // loop_body
                %v343 = vld [vmem:[%s341] sm:%s334]
                %344 = vst [vmem:[%s342] sm:%s334] %v343
                %v345 = vld [vmem:[%s341 + $0x8] sm:%s334]
                %346 = vst [vmem:[%s342 + $0x20] sm:%s334] %v345
                %v347 = vld [vmem:[%s341 + $0x10] sm:%s334]
                %348 = vst [vmem:[%s342 + $0x40] sm:%s334] %v347
                %v349 = vld [vmem:[%s341 + $0x18] sm:%s334]
                %350 = vst [vmem:[%s342 + $0x60] sm:%s334] %v349
                %v351 = vld [vmem:[%s341 + $0x20] sm:%s334]
                %352 = vst [vmem:[%s342 + $0x80] sm:%s334] %v351
                %v353 = vld [vmem:[%s341 + $0x28] sm:%s334]
                %354 = vst [vmem:[%s342 + $0xa0] sm:%s334] %v353
                %v355 = vld [vmem:[%s341 + $0x30] sm:%s334]
                %356 = vst [vmem:[%s342 + $0xc0] sm:%s334] %v355
                %v357 = vld [vmem:[%s341 + $0x38] sm:%s334]
                %358 = vst [vmem:[%s342 + $0xe0] sm:%s334] %v357
              $region53: #{decoder_rnn_forward.3} parent=47 // loop_footer
                %s340 = sadd.s32 1, %s336
              $region54: #{decoder_rnn_forward.3} parent=47 // loop_footer_branch
                %335 = sbr.rel target = $region50
              $region55: #{decoder_rnn_forward.3} parent=47 // loop_exit
                _
            $region48: #{decoder_rnn_forward.3} parent=39 // pred_fallthru
              _
          $region40: #{decoder_rnn_forward.3} parent=35 // pred_fallthru
            _
          %387 = vnop
        $region36: #{decoder_rnn_forward.3} parent=31 // pred_fallthru
          _
      $region32: #{decoder_rnn_forward.3} parent=5 // pred_fallthru
        _
      %p388 = scmp.le.s32.totalorder 2, %s9
      // Predicated region
      $region71: #{decoder_rnn_forward.3} parent=5 // pred_check
        %p389 = pneg %p388
      $region72: #{decoder_rnn_forward.3} parent=5 // pred_check_branch
        %391 = sbr.rel (%p389) target = $region74
      $region73: #{decoder_rnn_forward.3} parent=5 // pred_region
        %s392 = ssub.s32 %s9, 2
        // Predicated region
        $region75: #{decoder_rnn_forward.3} parent=73 // pred_check
          %p393 = pneg %p130
        $region76: #{decoder_rnn_forward.3} parent=73 // pred_check_branch
          %395 = sbr.rel (%p393) target = $region78
        $region77: #{decoder_rnn_forward.3} parent=73 // pred_region
          %s396 = sand.u32 %s115, 1
          %s397 = sand.u32 %s115, 1
          %s398 = smul.addr %s397, 64
          %s399 = scalar_lea.vmem [#allocation2], %s398
        $region78: #{decoder_rnn_forward.3} parent=73 // pred_fallthru
          _
      $region74: #{decoder_rnn_forward.3} parent=5 // pred_fallthru
        _
    $region6: #{decoder_rnn_forward.3} parent=1 // loop_footer
      %s13 = sadd.s32 1, %s9
    $region7: #{decoder_rnn_forward.3} parent=1 // loop_footer_branch
      %8 = sbr.rel target = $region3
    $region8: #{decoder_rnn_forward.3} parent=1 // loop_exit
      _

// kernel: decoder_rnn_forward.4
$region0: #{decoder_rnn_forward.4}
  #allocation0 [shape = 'u32[]', space=smem, size = 0x4, offset = 0x4, fixed_abs, tag = 'smem constant byte address 0x4 - core index']
  #allocation1 [shape = 'u32[72,128]{1,0:T(1,128)}', space=vmem, size = 0x9000, scoped, tag = 'internal scratch']
  #allocation2 [shape = 'f32[8,32]{1,0:T(8,128)}', space=vmem, size = 0x1000, scoped, tag = 'scratch operand']
  #allocation3 [shape = 'f32[8,32]{1,0:T(8,128)}', space=vmem, size = 0x1000, scoped, tag = 'scratch operand']
  %s0 = inlined_call_operand.vmem [shape: f32[8,4,8,32], index: 0, kind: input, shape index: {}]
  %s1 = inlined_call_operand.vmem [shape: bf16[4,32,32], index: 1, kind: input, shape index: {}]
  %s2 = inlined_call_operand.vmem [shape: f32[8,8,32], index: 2, kind: output, shape index: {}]
  %s3 = sld [smem:[#allocation0]]
  $region22: #{decoder_rnn_forward.4} parent=0
    _
  %s5 = ssub.s32 1, %s3
  %s6 = scalar_select 0, %s5, %s3
  // Predicated region
  $region2: #{decoder_rnn_forward.4} parent=0 // pred_check
    _
  $region3: #{decoder_rnn_forward.4} parent=0 // pred_check_branch
    %8 = sbr.rel (0) target = $region5
  $region4: #{decoder_rnn_forward.4} parent=0 // pred_region
    _
  $region5: #{decoder_rnn_forward.4} parent=0 // pred_fallthru
    _
  // Predicated region
  $region6: #{decoder_rnn_forward.4} parent=0 // pred_check
    _
  $region7: #{decoder_rnn_forward.4} parent=0 // pred_check_branch
    %10 = sbr.rel (0) target = $region9
  $region8: #{decoder_rnn_forward.4} parent=0 // pred_region
    _
  $region9: #{decoder_rnn_forward.4} parent=0 // pred_fallthru
    _
  %p12 = scmp.eq.s32.totalorder 0, 0
  // Predicated region
  $region10: #{decoder_rnn_forward.4} parent=0 // pred_check
    %p13 = pneg %p12
  $region11: #{decoder_rnn_forward.4} parent=0 // pred_check_branch
    %15 = sbr.rel (%p13) target = $region13
  $region12: #{decoder_rnn_forward.4} parent=0 // pred_region
    %vm16 = vcmask 261120
    %17 = vst.msk [vmem:[#allocation2] sm:$0xff] %vm16, 0.0
    %18 = vst.msk [vmem:[#allocation3] sm:$0xff] %vm16, 0.0
  $region13: #{decoder_rnn_forward.4} parent=0 // pred_fallthru
    _
  %v19 = vld [vmem:[%s1] sm:$0xf]
  %v20 = vld [vmem:[%s1 + $0x4] sm:$0xf]
  %v21 = vld [vmem:[%s1 + $0x8] sm:$0xf]
  %v22 = vld [vmem:[%s1 + $0xc] sm:$0xf]
  %s23 = scalar_lea.vmem %s1, 16
  %v24 = vld [vmem:[%s23] sm:$0xf]
  %v25 = vld [vmem:[%s23 + $0x4] sm:$0xf]
  %v26 = vld [vmem:[%s23 + $0x8] sm:$0xf]
  %v27 = vld [vmem:[%s23 + $0xc] sm:$0xf]
  %s28 = scalar_lea.vmem %s1, 32
  %v29 = vld [vmem:[%s28] sm:$0xf]
  %v30 = vld [vmem:[%s28 + $0x4] sm:$0xf]
  %v31 = vld [vmem:[%s28 + $0x8] sm:$0xf]
  %v32 = vld [vmem:[%s28 + $0xc] sm:$0xf]
  %s33 = scalar_lea.vmem %s1, 48
  %v34 = vld [vmem:[%s33] sm:$0xf]
  %v35 = vld [vmem:[%s33 + $0x4] sm:$0xf]
  %v36 = vld [vmem:[%s33 + $0x8] sm:$0xf]
  %v37 = vld [vmem:[%s33 + $0xc] sm:$0xf]
  %v38 = vld [vmem:[#allocation2] sm:$0xff]
  %v39 = vld [vmem:[#allocation3] sm:$0xff]
  %v40 = vpack.c.bf16 %v38, %v38
  %v41 = vld [vmem:[%s0] sm:$0xff]
  %v42 = vld [vmem:[%s0 + $0x8] sm:$0xff]
  %v43 = vld [vmem:[%s0 + $0x10] sm:$0xff]
  %v44 = vld [vmem:[%s0 + $0x18] sm:$0xff]
  %v49 = vunpack.c.l.b16 %v19
  %v50 = vunpack.c.l.b16 %v20
  %v51 = vunpack.c.l.b16 %v21
  %v52 = vunpack.c.l.b16 %v22
  %v53 = vpack.c.b16 %v50, %v49
  %v54 = vpack.c.b16 %v52, %v51
  %vm57 = vcmask 261120
  %v59 = vsel %vm57, %v40, 0
  %61 = vmatpush.bf16.msra.mxu0 0
  %62 = vmatpush.bf16.msra.mxu0 0
  %63 = vmatpush.bf16.msra.mxu0 0
  %64 = vmatpush.bf16.msra.mxu0 0
  %65 = vmatpush.bf16.msra.mxu0 0
  %66 = vmatpush.bf16.msra.mxu0 0
  %67 = vmatpush.bf16.msra.mxu0 %v54
  %68 = vmatpush.bf16.msra.mxu0 %v53
  %69 = vmatmul.bf16.gmra.mxu0 %v59
  %v70 = vpop.f32.mrf.mxu0
  %v71 = vadd.f32 0.0, %v70
  %v72 = vpop.f32.mrf.mxu0
  %73 = vdwg.mxu0
  %v74 = vadd.f32 %v41, %v71
  %v75 = vxor.u32 %v74, 2147483648
  %v76 = vmul.f32 %v75, 1.442695
  %v77 = vpow.pop %v76
  %v78 = vadd.f32 %v77, 1.0
  %v79 = vrcp.pop %v78
  %v80 = vmul.f32 %v78, %v79
  %v81 = vsub.f32 1.0, %v80
  %v82 = vmul.f32 %v79, %v81
  %v83 = vadd.f32 %v79, %v82
  %vm84 = vweird.f32 %v78
  %vm85 = vweird.f32 %v79
  %vm86 = vmor %vm84, %vm85
  %v87 = vsel %vm86, %v79, %v83
  %v88 = vand.u32 2147483647, %v78
  %vm89 = vcmp.eq.f32.partialorder %v88, 8.507059e+37
  %v90 = vand.u32 %v78, 2147483648
  %v91 = vor.u32 1.1754944e-38, %v90
  %v92 = vsel %vm89, %v91, %v87
  %v93 = vmul.f32 1.0, %v92
  %v98 = vunpack.c.l.b16 %v24
  %v99 = vunpack.c.l.b16 %v25
  %v100 = vunpack.c.l.b16 %v26
  %v101 = vunpack.c.l.b16 %v27
  %v102 = vpack.c.b16 %v99, %v98
  %v103 = vpack.c.b16 %v101, %v100
  %106 = vmatpush.bf16.msra.mxu0 0
  %107 = vmatpush.bf16.msra.mxu0 0
  %108 = vmatpush.bf16.msra.mxu0 0
  %109 = vmatpush.bf16.msra.mxu0 0
  %110 = vmatpush.bf16.msra.mxu0 0
  %111 = vmatpush.bf16.msra.mxu0 0
  %112 = vmatpush.bf16.msra.mxu0 %v103
  %113 = vmatpush.bf16.msra.mxu0 %v102
  %114 = vmatmul.bf16.gmra.mxu0 %v59
  %v115 = vpop.f32.mrf.mxu0
  %v116 = vadd.f32 0.0, %v115
  %v117 = vpop.f32.mrf.mxu0
  %118 = vdwg.mxu0
  %v119 = vadd.f32 %v42, %v116
  %v120 = vxor.u32 %v119, 2147483648
  %v121 = vmul.f32 %v120, 1.442695
  %v122 = vpow.pop %v121
  %v123 = vadd.f32 %v122, 1.0
  %v124 = vrcp.pop %v123
  %v125 = vmul.f32 %v123, %v124
  %v126 = vsub.f32 1.0, %v125
  %v127 = vmul.f32 %v124, %v126
  %v128 = vadd.f32 %v124, %v127
  %vm129 = vweird.f32 %v123
  %vm130 = vweird.f32 %v124
  %vm131 = vmor %vm129, %vm130
  %v132 = vsel %vm131, %v124, %v128
  %v133 = vand.u32 2147483647, %v123
  %vm134 = vcmp.eq.f32.partialorder %v133, 8.507059e+37
  %v135 = vand.u32 %v123, 2147483648
  %v136 = vor.u32 1.1754944e-38, %v135
  %v137 = vsel %vm134, %v136, %v132
  %v138 = vmul.f32 1.0, %v137
  %v143 = vunpack.c.l.b16 %v29
  %v144 = vunpack.c.l.b16 %v30
  %v145 = vunpack.c.l.b16 %v31
  %v146 = vunpack.c.l.b16 %v32
  %v147 = vpack.c.b16 %v144, %v143
  %v148 = vpack.c.b16 %v146, %v145
  %151 = vmatpush.bf16.msra.mxu0 0
  %152 = vmatpush.bf16.msra.mxu0 0
  %153 = vmatpush.bf16.msra.mxu0 0
  %154 = vmatpush.bf16.msra.mxu0 0
  %155 = vmatpush.bf16.msra.mxu0 0
  %156 = vmatpush.bf16.msra.mxu0 0
  %157 = vmatpush.bf16.msra.mxu0 %v148
  %158 = vmatpush.bf16.msra.mxu0 %v147
  %159 = vmatmul.bf16.gmra.mxu0 %v59
  %v160 = vpop.f32.mrf.mxu0
  %v161 = vadd.f32 0.0, %v160
  %v162 = vpop.f32.mrf.mxu0
  %163 = vdwg.mxu0
  %v164 = vadd.f32 %v43, %v161
  %v165 = vtanh.pop %v164
  %v170 = vunpack.c.l.b16 %v34
  %v171 = vunpack.c.l.b16 %v35
  %v172 = vunpack.c.l.b16 %v36
  %v173 = vunpack.c.l.b16 %v37
  %v174 = vpack.c.b16 %v171, %v170
  %v175 = vpack.c.b16 %v173, %v172
  %178 = vmatpush.bf16.msra.mxu0 0
  %179 = vmatpush.bf16.msra.mxu0 0
  %180 = vmatpush.bf16.msra.mxu0 0
  %181 = vmatpush.bf16.msra.mxu0 0
  %182 = vmatpush.bf16.msra.mxu0 0
  %183 = vmatpush.bf16.msra.mxu0 0
  %184 = vmatpush.bf16.msra.mxu0 %v175
  %185 = vmatpush.bf16.msra.mxu0 %v174
  %186 = vmatmul.bf16.gmra.mxu0 %v59
  %v187 = vpop.f32.mrf.mxu0
  %v188 = vadd.f32 0.0, %v187
  %v189 = vpop.f32.mrf.mxu0
  %190 = vdwg.mxu0
  %v191 = vadd.f32 %v44, %v188
  %v192 = vxor.u32 %v191, 2147483648
  %v193 = vmul.f32 %v192, 1.442695
  %v194 = vpow.pop %v193
  %v195 = vadd.f32 %v194, 1.0
  %v196 = vrcp.pop %v195
  %v197 = vmul.f32 %v195, %v196
  %v198 = vsub.f32 1.0, %v197
  %v199 = vmul.f32 %v196, %v198
  %v200 = vadd.f32 %v196, %v199
  %vm201 = vweird.f32 %v195
  %vm202 = vweird.f32 %v196
  %vm203 = vmor %vm201, %vm202
  %v204 = vsel %vm203, %v196, %v200
  %v205 = vand.u32 2147483647, %v195
  %vm206 = vcmp.eq.f32.partialorder %v205, 8.507059e+37
  %v207 = vand.u32 %v195, 2147483648
  %v208 = vor.u32 1.1754944e-38, %v207
  %v209 = vsel %vm206, %v208, %v204
  %v210 = vmul.f32 1.0, %v209
  %v211 = vmul.f32 %v138, %v39
  %v212 = vmul.f32 %v93, %v165
  %v213 = vadd.f32 %v211, %v212
  %v214 = vtanh.pop %v213
  %v215 = vmul.f32 %v210, %v214
  %216 = vst.msk [vmem:[%s2] sm:$0xff] %vm57, %v215
  %v217 = vpack.c.bf16 %v215, %v215
  %s218 = scalar_lea.vmem %s0, 32
  %v219 = vld [vmem:[%s218] sm:$0xff]
  %v220 = vld [vmem:[%s218 + $0x8] sm:$0xff]
  %v221 = vld [vmem:[%s218 + $0x10] sm:$0xff]
  %v222 = vld [vmem:[%s218 + $0x18] sm:$0xff]
  %v224 = vsel %vm57, %v217, 0
  %226 = vmatpush.bf16.msra.mxu0 0
  %227 = vmatpush.bf16.msra.mxu0 0
  %228 = vmatpush.bf16.msra.mxu0 0
  %229 = vmatpush.bf16.msra.mxu0 0
  %230 = vmatpush.bf16.msra.mxu0 0
  %231 = vmatpush.bf16.msra.mxu0 0
  %232 = vmatpush.bf16.msra.mxu0 %v54
  %233 = vmatpush.bf16.msra.mxu0 %v53
  %234 = vmatmul.bf16.gmra.mxu0 %v224
  %v235 = vpop.f32.mrf.mxu0
  %v236 = vadd.f32 0.0, %v235
  %v237 = vpop.f32.mrf.mxu0
  %238 = vdwg.mxu0
  %v239 = vadd.f32 %v219, %v236
  %v240 = vxor.u32 %v239, 2147483648
  %v241 = vmul.f32 %v240, 1.442695
  %v242 = vpow.pop %v241
  %v243 = vadd.f32 %v242, 1.0
  %v244 = vrcp.pop %v243
  %v245 = vmul.f32 %v243, %v244
  %v246 = vsub.f32 1.0, %v245
  %v247 = vmul.f32 %v244, %v246
  %v248 = vadd.f32 %v244, %v247
  %vm249 = vweird.f32 %v243
  %vm250 = vweird.f32 %v244
  %vm251 = vmor %vm249, %vm250
  %v252 = vsel %vm251, %v244, %v248
  %v253 = vand.u32 2147483647, %v243
  %vm254 = vcmp.eq.f32.partialorder %v253, 8.507059e+37
  %v255 = vand.u32 %v243, 2147483648
  %v256 = vor.u32 1.1754944e-38, %v255
  %v257 = vsel %vm254, %v256, %v252
  %v258 = vmul.f32 1.0, %v257
  %259 = vmatpush.bf16.msra.mxu0 0
  %260 = vmatpush.bf16.msra.mxu0 0
  %261 = vmatpush.bf16.msra.mxu0 0
  %262 = vmatpush.bf16.msra.mxu0 0
  %263 = vmatpush.bf16.msra.mxu0 0
  %264 = vmatpush.bf16.msra.mxu0 0
  %265 = vmatpush.bf16.msra.mxu0 %v103
  %266 = vmatpush.bf16.msra.mxu0 %v102
  %267 = vmatmul.bf16.gmra.mxu0 %v224
  %v268 = vpop.f32.mrf.mxu0
  %v269 = vadd.f32 0.0, %v268
  %v270 = vpop.f32.mrf.mxu0
  %271 = vdwg.mxu0
  %v272 = vadd.f32 %v220, %v269
  %v273 = vxor.u32 %v272, 2147483648
  %v274 = vmul.f32 %v273, 1.442695
  %v275 = vpow.pop %v274
  %v276 = vadd.f32 %v275, 1.0
  %v277 = vrcp.pop %v276
  %v278 = vmul.f32 %v276, %v277
  %v279 = vsub.f32 1.0, %v278
  %v280 = vmul.f32 %v277, %v279
  %v281 = vadd.f32 %v277, %v280
  %vm282 = vweird.f32 %v276
  %vm283 = vweird.f32 %v277
  %vm284 = vmor %vm282, %vm283
  %v285 = vsel %vm284, %v277, %v281
  %v286 = vand.u32 2147483647, %v276
  %vm287 = vcmp.eq.f32.partialorder %v286, 8.507059e+37
  %v288 = vand.u32 %v276, 2147483648
  %v289 = vor.u32 1.1754944e-38, %v288
  %v290 = vsel %vm287, %v289, %v285
  %v291 = vmul.f32 1.0, %v290
  %292 = vmatpush.bf16.msra.mxu0 0
  %293 = vmatpush.bf16.msra.mxu0 0
  %294 = vmatpush.bf16.msra.mxu0 0
  %295 = vmatpush.bf16.msra.mxu0 0
  %296 = vmatpush.bf16.msra.mxu0 0
  %297 = vmatpush.bf16.msra.mxu0 0
  %298 = vmatpush.bf16.msra.mxu0 %v148
  %299 = vmatpush.bf16.msra.mxu0 %v147
  %300 = vmatmul.bf16.gmra.mxu0 %v224
  %v301 = vpop.f32.mrf.mxu0
  %v302 = vadd.f32 0.0, %v301
  %v303 = vpop.f32.mrf.mxu0
  %304 = vdwg.mxu0
  %v305 = vadd.f32 %v221, %v302
  %v306 = vtanh.pop %v305
  %307 = vmatpush.bf16.msra.mxu0 0
  %308 = vmatpush.bf16.msra.mxu0 0
  %309 = vmatpush.bf16.msra.mxu0 0
  %310 = vmatpush.bf16.msra.mxu0 0
  %311 = vmatpush.bf16.msra.mxu0 0
  %312 = vmatpush.bf16.msra.mxu0 0
  %313 = vmatpush.bf16.msra.mxu0 %v175
  %314 = vmatpush.bf16.msra.mxu0 %v174
  %315 = vmatmul.bf16.gmra.mxu0 %v224
  %v316 = vpop.f32.mrf.mxu0
  %v317 = vadd.f32 0.0, %v316
  %v318 = vpop.f32.mrf.mxu0
  %319 = vdwg.mxu0
  %v320 = vadd.f32 %v222, %v317
  %v321 = vxor.u32 %v320, 2147483648
  %v322 = vmul.f32 %v321, 1.442695
  %v323 = vpow.pop %v322
  %v324 = vadd.f32 %v323, 1.0
  %v325 = vrcp.pop %v324
  %v326 = vmul.f32 %v324, %v325
  %v327 = vsub.f32 1.0, %v326
  %v328 = vmul.f32 %v325, %v327
  %v329 = vadd.f32 %v325, %v328
  %vm330 = vweird.f32 %v324
  %vm331 = vweird.f32 %v325
  %vm332 = vmor %vm330, %vm331
  %v333 = vsel %vm332, %v325, %v329
  %v334 = vand.u32 2147483647, %v324
  %vm335 = vcmp.eq.f32.partialorder %v334, 8.507059e+37
  %v336 = vand.u32 %v324, 2147483648
  %v337 = vor.u32 1.1754944e-38, %v336
  %v338 = vsel %vm335, %v337, %v333
  %v339 = vmul.f32 1.0, %v338
  %v340 = vmul.f32 %v291, %v213
  %v341 = vmul.f32 %v258, %v306
  %v342 = vadd.f32 %v340, %v341
  %v343 = vtanh.pop %v342
  %v344 = vmul.f32 %v339, %v343
  %s345 = scalar_lea.vmem %s2, 8
  %346 = vst.msk [vmem:[%s345] sm:$0xff] %vm57, %v344
  %v347 = vpack.c.bf16 %v344, %v344
  %s348 = scalar_lea.vmem %s0, 64
  %v349 = vld [vmem:[%s348] sm:$0xff]
  %v350 = vld [vmem:[%s348 + $0x8] sm:$0xff]
  %v351 = vld [vmem:[%s348 + $0x10] sm:$0xff]
  %v352 = vld [vmem:[%s348 + $0x18] sm:$0xff]
  %v354 = vsel %vm57, %v347, 0
  %356 = vmatpush.bf16.msra.mxu0 0
  %357 = vmatpush.bf16.msra.mxu0 0
  %358 = vmatpush.bf16.msra.mxu0 0
  %359 = vmatpush.bf16.msra.mxu0 0
  %360 = vmatpush.bf16.msra.mxu0 0
  %361 = vmatpush.bf16.msra.mxu0 0
  %362 = vmatpush.bf16.msra.mxu0 %v54
  %363 = vmatpush.bf16.msra.mxu0 %v53
  %364 = vmatmul.bf16.gmra.mxu0 %v354
  %v365 = vpop.f32.mrf.mxu0
  %v366 = vadd.f32 0.0, %v365
  %v367 = vpop.f32.mrf.mxu0
  %368 = vdwg.mxu0
  %v369 = vadd.f32 %v349, %v366
  %v370 = vxor.u32 %v369, 2147483648
  %v371 = vmul.f32 %v370, 1.442695
  %v372 = vpow.pop %v371
  %v373 = vadd.f32 %v372, 1.0
  %v374 = vrcp.pop %v373
  %v375 = vmul.f32 %v373, %v374
  %v376 = vsub.f32 1.0, %v375
  %v377 = vmul.f32 %v374, %v376
  %v378 = vadd.f32 %v374, %v377
  %vm379 = vweird.f32 %v373
  %vm380 = vweird.f32 %v374
  %vm381 = vmor %vm379, %vm380
  %v382 = vsel %vm381, %v374, %v378
  %v383 = vand.u32 2147483647, %v373
  %vm384 = vcmp.eq.f32.partialorder %v383, 8.507059e+37
  %v385 = vand.u32 %v373, 2147483648
  %v386 = vor.u32 1.1754944e-38, %v385
  %v387 = vsel %vm384, %v386, %v382
  %v388 = vmul.f32 1.0, %v387
  %389 = vmatpush.bf16.msra.mxu0 0
  %390 = vmatpush.bf16.msra.mxu0 0
  %391 = vmatpush.bf16.msra.mxu0 0
  %392 = vmatpush.bf16.msra.mxu0 0
  %393 = vmatpush.bf16.msra.mxu0 0
  %394 = vmatpush.bf16.msra.mxu0 0
  %395 = vmatpush.bf16.msra.mxu0 %v103
  %396 = vmatpush.bf16.msra.mxu0 %v102
  %397 = vmatmul.bf16.gmra.mxu0 %v354
  %v398 = vpop.f32.mrf.mxu0
  %v399 = vadd.f32 0.0, %v398
  %v400 = vpop.f32.mrf.mxu0
  %401 = vdwg.mxu0
  %v402 = vadd.f32 %v350, %v399
  %v403 = vxor.u32 %v402, 2147483648
  %v404 = vmul.f32 %v403, 1.442695
  %v405 = vpow.pop %v404
  %v406 = vadd.f32 %v405, 1.0
  %v407 = vrcp.pop %v406
  %v408 = vmul.f32 %v406, %v407
  %v409 = vsub.f32 1.0, %v408
  %v410 = vmul.f32 %v407, %v409
  %v411 = vadd.f32 %v407, %v410
  %vm412 = vweird.f32 %v406
  %vm413 = vweird.f32 %v407
  %vm414 = vmor %vm412, %vm413
  %v415 = vsel %vm414, %v407, %v411
  %v416 = vand.u32 2147483647, %v406
  %vm417 = vcmp.eq.f32.partialorder %v416, 8.507059e+37
  %v418 = vand.u32 %v406, 2147483648
  %v419 = vor.u32 1.1754944e-38, %v418
  %v420 = vsel %vm417, %v419, %v415
  %v421 = vmul.f32 1.0, %v420
  %422 = vmatpush.bf16.msra.mxu0 0
  %423 = vmatpush.bf16.msra.mxu0 0
  %424 = vmatpush.bf16.msra.mxu0 0
  %425 = vmatpush.bf16.msra.mxu0 0
  %426 = vmatpush.bf16.msra.mxu0 0
  %427 = vmatpush.bf16.msra.mxu0 0
  %428 = vmatpush.bf16.msra.mxu0 %v148
  %429 = vmatpush.bf16.msra.mxu0 %v147
  %430 = vmatmul.bf16.gmra.mxu0 %v354
  %v431 = vpop.f32.mrf.mxu0
  %v432 = vadd.f32 0.0, %v431
  %v433 = vpop.f32.mrf.mxu0
  %434 = vdwg.mxu0
  %v435 = vadd.f32 %v351, %v432
  %v436 = vtanh.pop %v435
  %437 = vmatpush.bf16.msra.mxu0 0
  %438 = vmatpush.bf16.msra.mxu0 0
  %439 = vmatpush.bf16.msra.mxu0 0
  %440 = vmatpush.bf16.msra.mxu0 0
  %441 = vmatpush.bf16.msra.mxu0 0
  %442 = vmatpush.bf16.msra.mxu0 0
  %443 = vmatpush.bf16.msra.mxu0 %v175
  %444 = vmatpush.bf16.msra.mxu0 %v174
  %445 = vmatmul.bf16.gmra.mxu0 %v354
  %v446 = vpop.f32.mrf.mxu0
  %v447 = vadd.f32 0.0, %v446
  %v448 = vpop.f32.mrf.mxu0
  %449 = vdwg.mxu0
  %v450 = vadd.f32 %v352, %v447
  %v451 = vxor.u32 %v450, 2147483648
  %v452 = vmul.f32 %v451, 1.442695
  %v453 = vpow.pop %v452
  %v454 = vadd.f32 %v453, 1.0
  %v455 = vrcp.pop %v454
  %v456 = vmul.f32 %v454, %v455
  %v457 = vsub.f32 1.0, %v456
  %v458 = vmul.f32 %v455, %v457
  %v459 = vadd.f32 %v455, %v458
  %vm460 = vweird.f32 %v454
  %vm461 = vweird.f32 %v455
  %vm462 = vmor %vm460, %vm461
  %v463 = vsel %vm462, %v455, %v459
  %v464 = vand.u32 2147483647, %v454
  %vm465 = vcmp.eq.f32.partialorder %v464, 8.507059e+37
  %v466 = vand.u32 %v454, 2147483648
  %v467 = vor.u32 1.1754944e-38, %v466
  %v468 = vsel %vm465, %v467, %v463
  %v469 = vmul.f32 1.0, %v468
  %v470 = vmul.f32 %v421, %v342
  %v471 = vmul.f32 %v388, %v436
  %v472 = vadd.f32 %v470, %v471
  %v473 = vtanh.pop %v472
  %v474 = vmul.f32 %v469, %v473
  %s475 = scalar_lea.vmem %s2, 16
  %476 = vst.msk [vmem:[%s475] sm:$0xff] %vm57, %v474
  %v477 = vpack.c.bf16 %v474, %v474
  %s478 = scalar_lea.vmem %s0, 96
  %v479 = vld [vmem:[%s478] sm:$0xff]
  %v480 = vld [vmem:[%s478 + $0x8] sm:$0xff]
  %v481 = vld [vmem:[%s478 + $0x10] sm:$0xff]
  %v482 = vld [vmem:[%s478 + $0x18] sm:$0xff]
  %v484 = vsel %vm57, %v477, 0
  %486 = vmatpush.bf16.msra.mxu0 0
  %487 = vmatpush.bf16.msra.mxu0 0
  %488 = vmatpush.bf16.msra.mxu0 0
  %489 = vmatpush.bf16.msra.mxu0 0
  %490 = vmatpush.bf16.msra.mxu0 0
  %491 = vmatpush.bf16.msra.mxu0 0
  %492 = vmatpush.bf16.msra.mxu0 %v54
  %493 = vmatpush.bf16.msra.mxu0 %v53
  %494 = vmatmul.bf16.gmra.mxu0 %v484
  %v495 = vpop.f32.mrf.mxu0
  %v496 = vadd.f32 0.0, %v495
  %v497 = vpop.f32.mrf.mxu0
  %498 = vdwg.mxu0
  %v499 = vadd.f32 %v479, %v496
  %v500 = vxor.u32 %v499, 2147483648
  %v501 = vmul.f32 %v500, 1.442695
  %v502 = vpow.pop %v501
  %v503 = vadd.f32 %v502, 1.0
  %v504 = vrcp.pop %v503
  %v505 = vmul.f32 %v503, %v504
  %v506 = vsub.f32 1.0, %v505
  %v507 = vmul.f32 %v504, %v506
  %v508 = vadd.f32 %v504, %v507
  %vm509 = vweird.f32 %v503
  %vm510 = vweird.f32 %v504
  %vm511 = vmor %vm509, %vm510
  %v512 = vsel %vm511, %v504, %v508
  %v513 = vand.u32 2147483647, %v503
  %vm514 = vcmp.eq.f32.partialorder %v513, 8.507059e+37
  %v515 = vand.u32 %v503, 2147483648
  %v516 = vor.u32 1.1754944e-38, %v515
  %v517 = vsel %vm514, %v516, %v512
  %v518 = vmul.f32 1.0, %v517
  %519 = vmatpush.bf16.msra.mxu0 0
  %520 = vmatpush.bf16.msra.mxu0 0
  %521 = vmatpush.bf16.msra.mxu0 0
  %522 = vmatpush.bf16.msra.mxu0 0
  %523 = vmatpush.bf16.msra.mxu0 0
  %524 = vmatpush.bf16.msra.mxu0 0
  %525 = vmatpush.bf16.msra.mxu0 %v103
  %526 = vmatpush.bf16.msra.mxu0 %v102
  %527 = vmatmul.bf16.gmra.mxu0 %v484
  %v528 = vpop.f32.mrf.mxu0
  %v529 = vadd.f32 0.0, %v528
  %v530 = vpop.f32.mrf.mxu0
  %531 = vdwg.mxu0
  %v532 = vadd.f32 %v480, %v529
  %v533 = vxor.u32 %v532, 2147483648
  %v534 = vmul.f32 %v533, 1.442695
  %v535 = vpow.pop %v534
  %v536 = vadd.f32 %v535, 1.0
  %v537 = vrcp.pop %v536
  %v538 = vmul.f32 %v536, %v537
  %v539 = vsub.f32 1.0, %v538
  %v540 = vmul.f32 %v537, %v539
  %v541 = vadd.f32 %v537, %v540
  %vm542 = vweird.f32 %v536
  %vm543 = vweird.f32 %v537
  %vm544 = vmor %vm542, %vm543
  %v545 = vsel %vm544, %v537, %v541
  %v546 = vand.u32 2147483647, %v536
  %vm547 = vcmp.eq.f32.partialorder %v546, 8.507059e+37
  %v548 = vand.u32 %v536, 2147483648
  %v549 = vor.u32 1.1754944e-38, %v548
  %v550 = vsel %vm547, %v549, %v545
  %v551 = vmul.f32 1.0, %v550
  %552 = vmatpush.bf16.msra.mxu0 0
  %553 = vmatpush.bf16.msra.mxu0 0
  %554 = vmatpush.bf16.msra.mxu0 0
  %555 = vmatpush.bf16.msra.mxu0 0
  %556 = vmatpush.bf16.msra.mxu0 0
  %557 = vmatpush.bf16.msra.mxu0 0
  %558 = vmatpush.bf16.msra.mxu0 %v148
  %559 = vmatpush.bf16.msra.mxu0 %v147
  %560 = vmatmul.bf16.gmra.mxu0 %v484
  %v561 = vpop.f32.mrf.mxu0
  %v562 = vadd.f32 0.0, %v561
  %v563 = vpop.f32.mrf.mxu0
  %564 = vdwg.mxu0
  %v565 = vadd.f32 %v481, %v562
  %v566 = vtanh.pop %v565
  %567 = vmatpush.bf16.msra.mxu0 0
  %568 = vmatpush.bf16.msra.mxu0 0
  %569 = vmatpush.bf16.msra.mxu0 0
  %570 = vmatpush.bf16.msra.mxu0 0
  %571 = vmatpush.bf16.msra.mxu0 0
  %572 = vmatpush.bf16.msra.mxu0 0
  %573 = vmatpush.bf16.msra.mxu0 %v175
  %574 = vmatpush.bf16.msra.mxu0 %v174
  %575 = vmatmul.bf16.gmra.mxu0 %v484
  %v576 = vpop.f32.mrf.mxu0
  %v577 = vadd.f32 0.0, %v576
  %v578 = vpop.f32.mrf.mxu0
  %579 = vdwg.mxu0
  %v580 = vadd.f32 %v482, %v577
  %v581 = vxor.u32 %v580, 2147483648
  %v582 = vmul.f32 %v581, 1.442695
  %v583 = vpow.pop %v582
  %v584 = vadd.f32 %v583, 1.0
  %v585 = vrcp.pop %v584
  %v586 = vmul.f32 %v584, %v585
  %v587 = vsub.f32 1.0, %v586
  %v588 = vmul.f32 %v585, %v587
  %v589 = vadd.f32 %v585, %v588
  %vm590 = vweird.f32 %v584
  %vm591 = vweird.f32 %v585
  %vm592 = vmor %vm590, %vm591
  %v593 = vsel %vm592, %v585, %v589
  %v594 = vand.u32 2147483647, %v584
  %vm595 = vcmp.eq.f32.partialorder %v594, 8.507059e+37
  %v596 = vand.u32 %v584, 2147483648
  %v597 = vor.u32 1.1754944e-38, %v596
  %v598 = vsel %vm595, %v597, %v593
  %v599 = vmul.f32 1.0, %v598
  %v600 = vmul.f32 %v551, %v472
  %v601 = vmul.f32 %v518, %v566
  %v602 = vadd.f32 %v600, %v601
  %v603 = vtanh.pop %v602
  %v604 = vmul.f32 %v599, %v603
  %s605 = scalar_lea.vmem %s2, 24
  %606 = vst.msk [vmem:[%s605] sm:$0xff] %vm57, %v604
  %v607 = vpack.c.bf16 %v604, %v604
  %s608 = scalar_lea.vmem %s0, 128
  %v609 = vld [vmem:[%s608] sm:$0xff]
  %v610 = vld [vmem:[%s608 + $0x8] sm:$0xff]
  %v611 = vld [vmem:[%s608 + $0x10] sm:$0xff]
  %v612 = vld [vmem:[%s608 + $0x18] sm:$0xff]
  %v614 = vsel %vm57, %v607, 0
  %616 = vmatpush.bf16.msra.mxu0 0
  %617 = vmatpush.bf16.msra.mxu0 0
  %618 = vmatpush.bf16.msra.mxu0 0
  %619 = vmatpush.bf16.msra.mxu0 0
  %620 = vmatpush.bf16.msra.mxu0 0
  %621 = vmatpush.bf16.msra.mxu0 0
  %622 = vmatpush.bf16.msra.mxu0 %v54
  %623 = vmatpush.bf16.msra.mxu0 %v53
  %624 = vmatmul.bf16.gmra.mxu0 %v614
  %v625 = vpop.f32.mrf.mxu0
  %v626 = vadd.f32 0.0, %v625
  %v627 = vpop.f32.mrf.mxu0
  %628 = vdwg.mxu0
  %v629 = vadd.f32 %v609, %v626
  %v630 = vxor.u32 %v629, 2147483648
  %v631 = vmul.f32 %v630, 1.442695
  %v632 = vpow.pop %v631
  %v633 = vadd.f32 %v632, 1.0
  %v634 = vrcp.pop %v633
  %v635 = vmul.f32 %v633, %v634
  %v636 = vsub.f32 1.0, %v635
  %v637 = vmul.f32 %v634, %v636
  %v638 = vadd.f32 %v634, %v637
  %vm639 = vweird.f32 %v633
  %vm640 = vweird.f32 %v634
  %vm641 = vmor %vm639, %vm640
  %v642 = vsel %vm641, %v634, %v638
  %v643 = vand.u32 2147483647, %v633
  %vm644 = vcmp.eq.f32.partialorder %v643, 8.507059e+37
  %v645 = vand.u32 %v633, 2147483648
  %v646 = vor.u32 1.1754944e-38, %v645
  %v647 = vsel %vm644, %v646, %v642
  %v648 = vmul.f32 1.0, %v647
  %649 = vmatpush.bf16.msra.mxu0 0
  %650 = vmatpush.bf16.msra.mxu0 0
  %651 = vmatpush.bf16.msra.mxu0 0
  %652 = vmatpush.bf16.msra.mxu0 0
  %653 = vmatpush.bf16.msra.mxu0 0
  %654 = vmatpush.bf16.msra.mxu0 0
  %655 = vmatpush.bf16.msra.mxu0 %v103
  %656 = vmatpush.bf16.msra.mxu0 %v102
  %657 = vmatmul.bf16.gmra.mxu0 %v614
  %v658 = vpop.f32.mrf.mxu0
  %v659 = vadd.f32 0.0, %v658
  %v660 = vpop.f32.mrf.mxu0
  %661 = vdwg.mxu0
  %v662 = vadd.f32 %v610, %v659
  %v663 = vxor.u32 %v662, 2147483648
  %v664 = vmul.f32 %v663, 1.442695
  %v665 = vpow.pop %v664
  %v666 = vadd.f32 %v665, 1.0
  %v667 = vrcp.pop %v666
  %v668 = vmul.f32 %v666, %v667
  %v669 = vsub.f32 1.0, %v668
  %v670 = vmul.f32 %v667, %v669
  %v671 = vadd.f32 %v667, %v670
  %vm672 = vweird.f32 %v666
  %vm673 = vweird.f32 %v667
  %vm674 = vmor %vm672, %vm673
  %v675 = vsel %vm674, %v667, %v671
  %v676 = vand.u32 2147483647, %v666
  %vm677 = vcmp.eq.f32.partialorder %v676, 8.507059e+37
  %v678 = vand.u32 %v666, 2147483648
  %v679 = vor.u32 1.1754944e-38, %v678
  %v680 = vsel %vm677, %v679, %v675
  %v681 = vmul.f32 1.0, %v680
  %682 = vmatpush.bf16.msra.mxu0 0
  %683 = vmatpush.bf16.msra.mxu0 0
  %684 = vmatpush.bf16.msra.mxu0 0
  %685 = vmatpush.bf16.msra.mxu0 0
  %686 = vmatpush.bf16.msra.mxu0 0
  %687 = vmatpush.bf16.msra.mxu0 0
  %688 = vmatpush.bf16.msra.mxu0 %v148
  %689 = vmatpush.bf16.msra.mxu0 %v147
  %690 = vmatmul.bf16.gmra.mxu0 %v614
  %v691 = vpop.f32.mrf.mxu0
  %v692 = vadd.f32 0.0, %v691
  %v693 = vpop.f32.mrf.mxu0
  %694 = vdwg.mxu0
  %v695 = vadd.f32 %v611, %v692
  %v696 = vtanh.pop %v695
  %697 = vmatpush.bf16.msra.mxu0 0
  %698 = vmatpush.bf16.msra.mxu0 0
  %699 = vmatpush.bf16.msra.mxu0 0
  %700 = vmatpush.bf16.msra.mxu0 0
  %701 = vmatpush.bf16.msra.mxu0 0
  %702 = vmatpush.bf16.msra.mxu0 0
  %703 = vmatpush.bf16.msra.mxu0 %v175
  %704 = vmatpush.bf16.msra.mxu0 %v174
  %705 = vmatmul.bf16.gmra.mxu0 %v614
  %v706 = vpop.f32.mrf.mxu0
  %v707 = vadd.f32 0.0, %v706
  %v708 = vpop.f32.mrf.mxu0
  %709 = vdwg.mxu0
  %v710 = vadd.f32 %v612, %v707
  %v711 = vxor.u32 %v710, 2147483648
  %v712 = vmul.f32 %v711, 1.442695
  %v713 = vpow.pop %v712
  %v714 = vadd.f32 %v713, 1.0
  %v715 = vrcp.pop %v714
  %v716 = vmul.f32 %v714, %v715
  %v717 = vsub.f32 1.0, %v716
  %v718 = vmul.f32 %v715, %v717
  %v719 = vadd.f32 %v715, %v718
  %vm720 = vweird.f32 %v714
  %vm721 = vweird.f32 %v715
  %vm722 = vmor %vm720, %vm721
  %v723 = vsel %vm722, %v715, %v719
  %v724 = vand.u32 2147483647, %v714
  %vm725 = vcmp.eq.f32.partialorder %v724, 8.507059e+37
  %v726 = vand.u32 %v714, 2147483648
  %v727 = vor.u32 1.1754944e-38, %v726
  %v728 = vsel %vm725, %v727, %v723
  %v729 = vmul.f32 1.0, %v728
  %v730 = vmul.f32 %v681, %v602
  %v731 = vmul.f32 %v648, %v696
  %v732 = vadd.f32 %v730, %v731
  %v733 = vtanh.pop %v732
  %v734 = vmul.f32 %v729, %v733
  %s735 = scalar_lea.vmem %s2, 32
  %736 = vst.msk [vmem:[%s735] sm:$0xff] %vm57, %v734
  %v737 = vpack.c.bf16 %v734, %v734
  %s738 = scalar_lea.vmem %s0, 160
  %v739 = vld [vmem:[%s738] sm:$0xff]
  %v740 = vld [vmem:[%s738 + $0x8] sm:$0xff]
  %v741 = vld [vmem:[%s738 + $0x10] sm:$0xff]
  %v742 = vld [vmem:[%s738 + $0x18] sm:$0xff]
  %v744 = vsel %vm57, %v737, 0
  %746 = vmatpush.bf16.msra.mxu0 0
  %747 = vmatpush.bf16.msra.mxu0 0
  %748 = vmatpush.bf16.msra.mxu0 0
  %749 = vmatpush.bf16.msra.mxu0 0
  %750 = vmatpush.bf16.msra.mxu0 0
  %751 = vmatpush.bf16.msra.mxu0 0
  %752 = vmatpush.bf16.msra.mxu0 %v54
  %753 = vmatpush.bf16.msra.mxu0 %v53
  %754 = vmatmul.bf16.gmra.mxu0 %v744
  %v755 = vpop.f32.mrf.mxu0
  %v756 = vadd.f32 0.0, %v755
  %v757 = vpop.f32.mrf.mxu0
  %758 = vdwg.mxu0
  %v759 = vadd.f32 %v739, %v756
  %v760 = vxor.u32 %v759, 2147483648
  %v761 = vmul.f32 %v760, 1.442695
  %v762 = vpow.pop %v761
  %v763 = vadd.f32 %v762, 1.0
  %v764 = vrcp.pop %v763
  %v765 = vmul.f32 %v763, %v764
  %v766 = vsub.f32 1.0, %v765
  %v767 = vmul.f32 %v764, %v766
  %v768 = vadd.f32 %v764, %v767
  %vm769 = vweird.f32 %v763
  %vm770 = vweird.f32 %v764
  %vm771 = vmor %vm769, %vm770
  %v772 = vsel %vm771, %v764, %v768
  %v773 = vand.u32 2147483647, %v763
  %vm774 = vcmp.eq.f32.partialorder %v773, 8.507059e+37
  %v775 = vand.u32 %v763, 2147483648
  %v776 = vor.u32 1.1754944e-38, %v775
  %v777 = vsel %vm774, %v776, %v772
  %v778 = vmul.f32 1.0, %v777
  %779 = vmatpush.bf16.msra.mxu0 0
  %780 = vmatpush.bf16.msra.mxu0 0
  %781 = vmatpush.bf16.msra.mxu0 0
  %782 = vmatpush.bf16.msra.mxu0 0
  %783 = vmatpush.bf16.msra.mxu0 0
  %784 = vmatpush.bf16.msra.mxu0 0
  %785 = vmatpush.bf16.msra.mxu0 %v103
  %786 = vmatpush.bf16.msra.mxu0 %v102
  %787 = vmatmul.bf16.gmra.mxu0 %v744
  %v788 = vpop.f32.mrf.mxu0
  %v789 = vadd.f32 0.0, %v788
  %v790 = vpop.f32.mrf.mxu0
  %791 = vdwg.mxu0
  %v792 = vadd.f32 %v740, %v789
  %v793 = vxor.u32 %v792, 2147483648
  %v794 = vmul.f32 %v793, 1.442695
  %v795 = vpow.pop %v794
  %v796 = vadd.f32 %v795, 1.0
  %v797 = vrcp.pop %v796
  %v798 = vmul.f32 %v796, %v797
  %v799 = vsub.f32 1.0, %v798
  %v800 = vmul.f32 %v797, %v799
  %v801 = vadd.f32 %v797, %v800
  %vm802 = vweird.f32 %v796
  %vm803 = vweird.f32 %v797
  %vm804 = vmor %vm802, %vm803
  %v805 = vsel %vm804, %v797, %v801
  %v806 = vand.u32 2147483647, %v796
  %vm807 = vcmp.eq.f32.partialorder %v806, 8.507059e+37
  %v808 = vand.u32 %v796, 2147483648
  %v809 = vor.u32 1.1754944e-38, %v808
  %v810 = vsel %vm807, %v809, %v805
  %v811 = vmul.f32 1.0, %v810
  %812 = vmatpush.bf16.msra.mxu0 0
  %813 = vmatpush.bf16.msra.mxu0 0
  %814 = vmatpush.bf16.msra.mxu0 0
  %815 = vmatpush.bf16.msra.mxu0 0
  %816 = vmatpush.bf16.msra.mxu0 0
  %817 = vmatpush.bf16.msra.mxu0 0
  %818 = vmatpush.bf16.msra.mxu0 %v148
  %819 = vmatpush.bf16.msra.mxu0 %v147
  %820 = vmatmul.bf16.gmra.mxu0 %v744
  %v821 = vpop.f32.mrf.mxu0
  %v822 = vadd.f32 0.0, %v821
  %v823 = vpop.f32.mrf.mxu0
  %824 = vdwg.mxu0
  %v825 = vadd.f32 %v741, %v822
  %v826 = vtanh.pop %v825
  %827 = vmatpush.bf16.msra.mxu0 0
  %828 = vmatpush.bf16.msra.mxu0 0
  %829 = vmatpush.bf16.msra.mxu0 0
  %830 = vmatpush.bf16.msra.mxu0 0
  %831 = vmatpush.bf16.msra.mxu0 0
  %832 = vmatpush.bf16.msra.mxu0 0
  %833 = vmatpush.bf16.msra.mxu0 %v175
  %834 = vmatpush.bf16.msra.mxu0 %v174
  %835 = vmatmul.bf16.gmra.mxu0 %v744
  %v836 = vpop.f32.mrf.mxu0
  %v837 = vadd.f32 0.0, %v836
  %v838 = vpop.f32.mrf.mxu0
  %839 = vdwg.mxu0
  %v840 = vadd.f32 %v742, %v837
  %v841 = vxor.u32 %v840, 2147483648
  %v842 = vmul.f32 %v841, 1.442695
  %v843 = vpow.pop %v842
  %v844 = vadd.f32 %v843, 1.0
  %v845 = vrcp.pop %v844
  %v846 = vmul.f32 %v844, %v845
  %v847 = vsub.f32 1.0, %v846
  %v848 = vmul.f32 %v845, %v847
  %v849 = vadd.f32 %v845, %v848
  %vm850 = vweird.f32 %v844
  %vm851 = vweird.f32 %v845
  %vm852 = vmor %vm850, %vm851
  %v853 = vsel %vm852, %v845, %v849
  %v854 = vand.u32 2147483647, %v844
  %vm855 = vcmp.eq.f32.partialorder %v854, 8.507059e+37
  %v856 = vand.u32 %v844, 2147483648
  %v857 = vor.u32 1.1754944e-38, %v856
  %v858 = vsel %vm855, %v857, %v853
  %v859 = vmul.f32 1.0, %v858
  %v860 = vmul.f32 %v811, %v732
  %v861 = vmul.f32 %v778, %v826
  %v862 = vadd.f32 %v860, %v861
  %v863 = vtanh.pop %v862
  %v864 = vmul.f32 %v859, %v863
  %s865 = scalar_lea.vmem %s2, 40
  %866 = vst.msk [vmem:[%s865] sm:$0xff] %vm57, %v864
  %v867 = vpack.c.bf16 %v864, %v864
  %s868 = scalar_lea.vmem %s0, 192
  %v869 = vld [vmem:[%s868] sm:$0xff]
  %v870 = vld [vmem:[%s868 + $0x8] sm:$0xff]
  %v871 = vld [vmem:[%s868 + $0x10] sm:$0xff]
  %v872 = vld [vmem:[%s868 + $0x18] sm:$0xff]
  %v874 = vsel %vm57, %v867, 0
  %876 = vmatpush.bf16.msra.mxu0 0
  %877 = vmatpush.bf16.msra.mxu0 0
  %878 = vmatpush.bf16.msra.mxu0 0
  %879 = vmatpush.bf16.msra.mxu0 0
  %880 = vmatpush.bf16.msra.mxu0 0
  %881 = vmatpush.bf16.msra.mxu0 0
  %882 = vmatpush.bf16.msra.mxu0 %v54
  %883 = vmatpush.bf16.msra.mxu0 %v53
  %884 = vmatmul.bf16.gmra.mxu0 %v874
  %v885 = vpop.f32.mrf.mxu0
  %v886 = vadd.f32 0.0, %v885
  %v887 = vpop.f32.mrf.mxu0
  %888 = vdwg.mxu0
  %v889 = vadd.f32 %v869, %v886
  %v890 = vxor.u32 %v889, 2147483648
  %v891 = vmul.f32 %v890, 1.442695
  %v892 = vpow.pop %v891
  %v893 = vadd.f32 %v892, 1.0
  %v894 = vrcp.pop %v893
  %v895 = vmul.f32 %v893, %v894
  %v896 = vsub.f32 1.0, %v895
  %v897 = vmul.f32 %v894, %v896
  %v898 = vadd.f32 %v894, %v897
  %vm899 = vweird.f32 %v893
  %vm900 = vweird.f32 %v894
  %vm901 = vmor %vm899, %vm900
  %v902 = vsel %vm901, %v894, %v898
  %v903 = vand.u32 2147483647, %v893
  %vm904 = vcmp.eq.f32.partialorder %v903, 8.507059e+37
  %v905 = vand.u32 %v893, 2147483648
  %v906 = vor.u32 1.1754944e-38, %v905
  %v907 = vsel %vm904, %v906, %v902
  %v908 = vmul.f32 1.0, %v907
  %909 = vmatpush.bf16.msra.mxu0 0
  %910 = vmatpush.bf16.msra.mxu0 0
  %911 = vmatpush.bf16.msra.mxu0 0
  %912 = vmatpush.bf16.msra.mxu0 0
  %913 = vmatpush.bf16.msra.mxu0 0
  %914 = vmatpush.bf16.msra.mxu0 0
  %915 = vmatpush.bf16.msra.mxu0 %v103
  %916 = vmatpush.bf16.msra.mxu0 %v102
  %917 = vmatmul.bf16.gmra.mxu0 %v874
  %v918 = vpop.f32.mrf.mxu0
  %v919 = vadd.f32 0.0, %v918
  %v920 = vpop.f32.mrf.mxu0
  %921 = vdwg.mxu0
  %v922 = vadd.f32 %v870, %v919
  %v923 = vxor.u32 %v922, 2147483648
  %v924 = vmul.f32 %v923, 1.442695
  %v925 = vpow.pop %v924
  %v926 = vadd.f32 %v925, 1.0
  %v927 = vrcp.pop %v926
  %v928 = vmul.f32 %v926, %v927
  %v929 = vsub.f32 1.0, %v928
  %v930 = vmul.f32 %v927, %v929
  %v931 = vadd.f32 %v927, %v930
  %vm932 = vweird.f32 %v926
  %vm933 = vweird.f32 %v927
  %vm934 = vmor %vm932, %vm933
  %v935 = vsel %vm934, %v927, %v931
  %v936 = vand.u32 2147483647, %v926
  %vm937 = vcmp.eq.f32.partialorder %v936, 8.507059e+37
  %v938 = vand.u32 %v926, 2147483648
  %v939 = vor.u32 1.1754944e-38, %v938
  %v940 = vsel %vm937, %v939, %v935
  %v941 = vmul.f32 1.0, %v940
  %942 = vmatpush.bf16.msra.mxu0 0
  %943 = vmatpush.bf16.msra.mxu0 0
  %944 = vmatpush.bf16.msra.mxu0 0
  %945 = vmatpush.bf16.msra.mxu0 0
  %946 = vmatpush.bf16.msra.mxu0 0
  %947 = vmatpush.bf16.msra.mxu0 0
  %948 = vmatpush.bf16.msra.mxu0 %v148
  %949 = vmatpush.bf16.msra.mxu0 %v147
  %950 = vmatmul.bf16.gmra.mxu0 %v874
  %v951 = vpop.f32.mrf.mxu0
  %v952 = vadd.f32 0.0, %v951
  %v953 = vpop.f32.mrf.mxu0
  %954 = vdwg.mxu0
  %v955 = vadd.f32 %v871, %v952
  %v956 = vtanh.pop %v955
  %957 = vmatpush.bf16.msra.mxu0 0
  %958 = vmatpush.bf16.msra.mxu0 0
  %959 = vmatpush.bf16.msra.mxu0 0
  %960 = vmatpush.bf16.msra.mxu0 0
  %961 = vmatpush.bf16.msra.mxu0 0
  %962 = vmatpush.bf16.msra.mxu0 0
  %963 = vmatpush.bf16.msra.mxu0 %v175
  %964 = vmatpush.bf16.msra.mxu0 %v174
  %965 = vmatmul.bf16.gmra.mxu0 %v874
  %v966 = vpop.f32.mrf.mxu0
  %v967 = vadd.f32 0.0, %v966
  %v968 = vpop.f32.mrf.mxu0
  %969 = vdwg.mxu0
  %v970 = vadd.f32 %v872, %v967
  %v971 = vxor.u32 %v970, 2147483648
  %v972 = vmul.f32 %v971, 1.442695
  %v973 = vpow.pop %v972
  %v974 = vadd.f32 %v973, 1.0
  %v975 = vrcp.pop %v974
  %v976 = vmul.f32 %v974, %v975
  %v977 = vsub.f32 1.0, %v976
  %v978 = vmul.f32 %v975, %v977
  %v979 = vadd.f32 %v975, %v978
  %vm980 = vweird.f32 %v974
  %vm981 = vweird.f32 %v975
  %vm982 = vmor %vm980, %vm981
  %v983 = vsel %vm982, %v975, %v979
  %v984 = vand.u32 2147483647, %v974
  %vm985 = vcmp.eq.f32.partialorder %v984, 8.507059e+37
  %v986 = vand.u32 %v974, 2147483648
  %v987 = vor.u32 1.1754944e-38, %v986
  %v988 = vsel %vm985, %v987, %v983
  %v989 = vmul.f32 1.0, %v988
  %v990 = vmul.f32 %v941, %v862
  %v991 = vmul.f32 %v908, %v956
  %v992 = vadd.f32 %v990, %v991
  %v993 = vtanh.pop %v992
  %v994 = vmul.f32 %v989, %v993
  %s995 = scalar_lea.vmem %s2, 48
  %996 = vst.msk [vmem:[%s995] sm:$0xff] %vm57, %v994
  %v997 = vpack.c.bf16 %v994, %v994
  %s998 = scalar_lea.vmem %s0, 224
  %v999 = vld [vmem:[%s998] sm:$0xff]
  %v1000 = vld [vmem:[%s998 + $0x8] sm:$0xff]
  %v1001 = vld [vmem:[%s998 + $0x10] sm:$0xff]
  %v1002 = vld [vmem:[%s998 + $0x18] sm:$0xff]
  %v1004 = vsel %vm57, %v997, 0
  %1006 = vmatpush.bf16.msra.mxu0 0
  %1007 = vmatpush.bf16.msra.mxu0 0
  %1008 = vmatpush.bf16.msra.mxu0 0
  %1009 = vmatpush.bf16.msra.mxu0 0
  %1010 = vmatpush.bf16.msra.mxu0 0
  %1011 = vmatpush.bf16.msra.mxu0 0
  %1012 = vmatpush.bf16.msra.mxu0 %v54
  %1013 = vmatpush.bf16.msra.mxu0 %v53
  %1014 = vmatmul.bf16.gmra.mxu0 %v1004
  %v1015 = vpop.f32.mrf.mxu0
  %v1016 = vadd.f32 0.0, %v1015
  %v1017 = vpop.f32.mrf.mxu0
  %1018 = vdwg.mxu0
  %v1019 = vadd.f32 %v999, %v1016
  %v1020 = vxor.u32 %v1019, 2147483648
  %v1021 = vmul.f32 %v1020, 1.442695
  %v1022 = vpow.pop %v1021
  %v1023 = vadd.f32 %v1022, 1.0
  %v1024 = vrcp.pop %v1023
  %v1025 = vmul.f32 %v1023, %v1024
  %v1026 = vsub.f32 1.0, %v1025
  %v1027 = vmul.f32 %v1024, %v1026
  %v1028 = vadd.f32 %v1024, %v1027
  %vm1029 = vweird.f32 %v1023
  %vm1030 = vweird.f32 %v1024
  %vm1031 = vmor %vm1029, %vm1030
  %v1032 = vsel %vm1031, %v1024, %v1028
  %v1033 = vand.u32 2147483647, %v1023
  %vm1034 = vcmp.eq.f32.partialorder %v1033, 8.507059e+37
  %v1035 = vand.u32 %v1023, 2147483648
  %v1036 = vor.u32 1.1754944e-38, %v1035
  %v1037 = vsel %vm1034, %v1036, %v1032
  %v1038 = vmul.f32 1.0, %v1037
  %1039 = vmatpush.bf16.msra.mxu0 0
  %1040 = vmatpush.bf16.msra.mxu0 0
  %1041 = vmatpush.bf16.msra.mxu0 0
  %1042 = vmatpush.bf16.msra.mxu0 0
  %1043 = vmatpush.bf16.msra.mxu0 0
  %1044 = vmatpush.bf16.msra.mxu0 0
  %1045 = vmatpush.bf16.msra.mxu0 %v103
  %1046 = vmatpush.bf16.msra.mxu0 %v102
  %1047 = vmatmul.bf16.gmra.mxu0 %v1004
  %v1048 = vpop.f32.mrf.mxu0
  %v1049 = vadd.f32 0.0, %v1048
  %v1050 = vpop.f32.mrf.mxu0
  %1051 = vdwg.mxu0
  %v1052 = vadd.f32 %v1000, %v1049
  %v1053 = vxor.u32 %v1052, 2147483648
  %v1054 = vmul.f32 %v1053, 1.442695
  %v1055 = vpow.pop %v1054
  %v1056 = vadd.f32 %v1055, 1.0
  %v1057 = vrcp.pop %v1056
  %v1058 = vmul.f32 %v1056, %v1057
  %v1059 = vsub.f32 1.0, %v1058
  %v1060 = vmul.f32 %v1057, %v1059
  %v1061 = vadd.f32 %v1057, %v1060
  %vm1062 = vweird.f32 %v1056
  %vm1063 = vweird.f32 %v1057
  %vm1064 = vmor %vm1062, %vm1063
  %v1065 = vsel %vm1064, %v1057, %v1061
  %v1066 = vand.u32 2147483647, %v1056
  %vm1067 = vcmp.eq.f32.partialorder %v1066, 8.507059e+37
  %v1068 = vand.u32 %v1056, 2147483648
  %v1069 = vor.u32 1.1754944e-38, %v1068
  %v1070 = vsel %vm1067, %v1069, %v1065
  %v1071 = vmul.f32 1.0, %v1070
  %1072 = vmatpush.bf16.msra.mxu0 0
  %1073 = vmatpush.bf16.msra.mxu0 0
  %1074 = vmatpush.bf16.msra.mxu0 0
  %1075 = vmatpush.bf16.msra.mxu0 0
  %1076 = vmatpush.bf16.msra.mxu0 0
  %1077 = vmatpush.bf16.msra.mxu0 0
  %1078 = vmatpush.bf16.msra.mxu0 %v148
  %1079 = vmatpush.bf16.msra.mxu0 %v147
  %1080 = vmatmul.bf16.gmra.mxu0 %v1004
  %v1081 = vpop.f32.mrf.mxu0
  %v1082 = vadd.f32 0.0, %v1081
  %v1083 = vpop.f32.mrf.mxu0
  %1084 = vdwg.mxu0
  %v1085 = vadd.f32 %v1001, %v1082
  %v1086 = vtanh.pop %v1085
  %1087 = vmatpush.bf16.msra.mxu0 0
  %1088 = vmatpush.bf16.msra.mxu0 0
  %1089 = vmatpush.bf16.msra.mxu0 0
  %1090 = vmatpush.bf16.msra.mxu0 0
  %1091 = vmatpush.bf16.msra.mxu0 0
  %1092 = vmatpush.bf16.msra.mxu0 0
  %1093 = vmatpush.bf16.msra.mxu0 %v175
  %1094 = vmatpush.bf16.msra.mxu0 %v174
  %1095 = vmatmul.bf16.gmra.mxu0 %v1004
  %v1096 = vpop.f32.mrf.mxu0
  %v1097 = vadd.f32 0.0, %v1096
  %v1098 = vpop.f32.mrf.mxu0
  %1099 = vdwg.mxu0
  %v1100 = vadd.f32 %v1002, %v1097
  %v1101 = vxor.u32 %v1100, 2147483648
  %v1102 = vmul.f32 %v1101, 1.442695
  %v1103 = vpow.pop %v1102
  %v1104 = vadd.f32 %v1103, 1.0
  %v1105 = vrcp.pop %v1104
  %v1106 = vmul.f32 %v1104, %v1105
  %v1107 = vsub.f32 1.0, %v1106
  %v1108 = vmul.f32 %v1105, %v1107
  %v1109 = vadd.f32 %v1105, %v1108
  %vm1110 = vweird.f32 %v1104
  %vm1111 = vweird.f32 %v1105
  %vm1112 = vmor %vm1110, %vm1111
  %v1113 = vsel %vm1112, %v1105, %v1109
  %v1114 = vand.u32 2147483647, %v1104
  %vm1115 = vcmp.eq.f32.partialorder %v1114, 8.507059e+37
  %v1116 = vand.u32 %v1104, 2147483648
  %v1117 = vor.u32 1.1754944e-38, %v1116
  %v1118 = vsel %vm1115, %v1117, %v1113
  %v1119 = vmul.f32 1.0, %v1118
  %v1120 = vmul.f32 %v1071, %v992
  %v1121 = vmul.f32 %v1038, %v1086
  %v1122 = vadd.f32 %v1120, %v1121
  %v1123 = vtanh.pop %v1122
  %v1124 = vmul.f32 %v1119, %v1123
  %s1125 = scalar_lea.vmem %s2, 56
  %1126 = vst.msk [vmem:[%s1125] sm:$0xff] %vm57, %v1124
  %1127 = vst.msk [vmem:[#allocation2] sm:$0xff] %vm57, %v1124
  %1128 = vst.msk [vmem:[#allocation3] sm:$0xff] %vm57, %v1122
  // Predicated region
  $region14: #{decoder_rnn_forward.4} parent=0 // pred_check
    _
  $region15: #{decoder_rnn_forward.4} parent=0 // pred_check_branch
    %1130 = sbr.rel (0) target = $region17
  $region16: #{decoder_rnn_forward.4} parent=0 // pred_region
    _
  $region17: #{decoder_rnn_forward.4} parent=0 // pred_fallthru
    _
  // Predicated region
  $region18: #{decoder_rnn_forward.4} parent=0 // pred_check
    _
  $region19: #{decoder_rnn_forward.4} parent=0 // pred_check_branch
    %1132 = sbr.rel (0) target = $region21
  $region20: #{decoder_rnn_forward.4} parent=0 // pred_region
    _
  $region21: #{decoder_rnn_forward.4} parent=0 // pred_fallthru
    _

</llo_original>
